<compile_context>
chip_gen: v6e
topology: v6e:2x2x1
jax: 0.10.0
libtpu: 0.0.40
codegen_flags: <defaults>
</compile_context>

<pallas_src>
import jax
import jax.numpy as jnp
from jax import lax
from jax.experimental import pallas as pl
from jax.experimental.pallas import tpu as pltpu

LANE = 128              # vreg lane width; block-diag hidden width padded to it
GROUPS_PER_STEP = 4     # asset groups interleaved per grid step (clamped to NG)


def _round_up(x, m):
    return ((x + m - 1) // m) * m


def _default_pack_lanes(A, H):
    """v6e/v7x MXUs are 2x256x256 -> pack 256 lanes when that actually merges
    more assets per group; v5e (4x128x128) and small models stay at 128."""
    if A * H <= LANE:
        return LANE
    try:
        kind = jax.devices()[0].device_kind.lower()
    except Exception:
        return LANE
    if any(tag in kind for tag in ("v6", "v7", "trillium")):
        return 2 * LANE
    return LANE


def _vmem_block_bytes(shape, dtype):
    """Pessimistic VMEM footprint of one pipeline buffer for a block."""
    itemsize = jnp.dtype(dtype).itemsize
    s = list(shape)
    if len(s) >= 1:
        s[-1] = _round_up(s[-1], LANE)
    if len(s) >= 2:
        s[-2] = _round_up(s[-2], 8 * max(1, 4 // itemsize))
    n = 1
    for d in s:
        n *= d
    return n * itemsize


# ----------------------------------------------------------------------------
# Fused kernel factory: packed multi-layer tanh RNN for Gpb interleaved asset
# groups + fused 1x1-conv head producing lane-dense per-asset logits.
# ----------------------------------------------------------------------------
def _make_rnn_kernel(*, L, T, Bp, Gpb, has_ihr, w_dtype):
    def kernel(*refs):
        it = iter(refs)
        obs_ref = next(it)                            # (Gpb, T*Bp, G*F)
        w_ih0_ref = next(it)                          # (Gpb, G*F, GHp)
        w_ihr_ref = next(it) if has_ihr else None     # (Gpb, L-1, GHp, GHp)
        w_hh_ref = next(it)                           # (Gpb, L, GHp, GHp)
        b_ref = next(it)                              # (Gpb, L, 1, GHp)  f32
        w_head_ref = next(it)                         # (1, GHp, OUTL) shared
        out_ref = next(it)                            # (Gpb, Bp, OUTL)   f32
        xproj_refs = [next(it) for _ in range(Gpb)]   # (T*Bp, GHp) f32 scratch
        hseq_refs = ([next(it) for _ in range(Gpb)]
                     if has_ihr else [None] * Gpb)    # (T*Bp, GHp) f32 scratch

        GH = xproj_refs[0].shape[-1]

        h_last = [None] * Gpb
        for l in range(L):                            # L is small & static
            # Per-layer input projection for ALL timesteps and ALL interleaved
            # groups in a few big matmuls, off the serial recurrence path.
            for g in range(Gpb):
                if l == 0:
                    x_flat = obs_ref[g]               # (T*Bp, G*F)
                    w_in = w_ih0_ref[g]               # (G*F, GHp)
                else:
                    x_flat = hseq_refs[g][...]        # (T*Bp, GHp)
                    w_in = w_ihr_ref[g, l - 1]        # (GHp, GHp)
                xproj_refs[g][...] = (
                    jnp.dot(x_flat.astype(w_dtype), w_in,
                            preferred_element_type=jnp.float32)
                    + b_ref[g, l])                    # combined bias, f32

            write_seq = l < L - 1   # last layer's sequence is never read

            def step(t, hs, l=l, write_seq=write_seq):
                start = pl.multiple_of(t * Bp, Bp)
                new_hs = []
                # Gpb independent recurrences issued back-to-back each
                # timestep -> ILP to hide MXU drain + EUP tanh latency.
                for g in range(Gpb):
                    h_new = jnp.tanh(
                        xproj_refs[g][pl.ds(start, Bp), :]
                        + jnp.dot(hs[g].astype(w_dtype), w_hh_ref[g, l],
                                  preferred_element_type=jnp.float32))
                    if write_seq:
                        hseq_refs[g][pl.ds(start, Bp), :] = h_new
                    new_hs.append(h_new)
                return tuple(new_hs)

            init = tuple(jnp.zeros((Bp, GH), jnp.float32) for _ in range(Gpb))
            h_last = lax.fori_loop(0, T, step, init,
                                   unroll=(True if T <= 16 else 4))

        # Fused 1x1-conv head: lane-dense (Bp, OUTL) store per group.
        w_head = w_head_ref[0]
        for g in range(Gpb):
            out_ref[g] = jnp.dot(h_last[g].astype(w_dtype), w_head,
                                 preferred_element_type=jnp.float32
                                 ).astype(out_ref.dtype)

    return kernel


# ----------------------------------------------------------------------------
# Wrapper
# ----------------------------------------------------------------------------
@jax.jit
def eiie_recurrent_forward(observation, last_action, packed):
    """observation: (B, F, A, T)  (PyTorch NCHW: batch, features, assets, time)
       last_action: (B, A+1)      [cash, stock_1, ..., stock_A]
       returns:     (B, A+1)      softmax portfolio weights
    """
    B, F, A, T = observation.shape
    w_ih0_bd = packed["w_ih0_bd"]      # (NGp, G*F, GHp)
    w_hh_bd = packed["w_hh_bd"]        # (NGp, L, GHp, GHp)
    b_bd = packed["b_bd"]              # (NGp, L, 1, GHp)   f32 (b_ih + b_hh)
    w_head_bd = packed["w_head_bd"]    # (1, GHp, OUTL)     group-invariant
    conv_w0 = packed["conv_w0"]
    conv_b = packed["conv_b"]
    has_ihr = "w_ihr_bd" in packed
    w_ihr_bd = packed["w_ihr_bd"] if has_ihr else None

    NGp, L, GHp = w_hh_bd.shape[0], w_hh_bd.shape[1], w_hh_bd.shape[-1]
    Lr = w_ihr_bd.shape[1] if has_ihr else 0
    out_lanes = w_head_bd.shape[-1]
    GF = w_ih0_bd.shape[1]
    G = GF // F
    w_dtype = w_hh_bd.dtype

    NG_raw = -(-A // G)
    Gpb = min(GROUPS_PER_STEP, NG_raw)
    assert NGp == _round_up(NG_raw, Gpb), "packed params inconsistent with obs"
    A_pad = NGp * G
    Bp = max(_round_up(B, 8), 8)       # pad batch to full sublanes
    TB = T * Bp
    n_steps = NGp // Gpb

    # obs layout: (B,F,A,T) -> per-group (t,b)-flattened, lane dim = G*F.
    # TODO(synk): at production B/T fold more of (T,G,F) into the lane axis —
    # G*F << 128 keeps this block lane-sparse (low priority at demo sizes).
    obs = jnp.transpose(observation.astype(jnp.float32), (2, 3, 0, 1))
    obs = jnp.pad(obs, ((0, A_pad - A), (0, 0), (0, Bp - B), (0, 0)))
    obs = obs.reshape(NGp, G, T, Bp, F)
    obs = jnp.transpose(obs, (0, 2, 3, 1, 4))        # (NGp, T, Bp, G, F)
    obs_g = obs.reshape(NGp, TB, GF).astype(w_dtype)

    in_specs = [
        pl.BlockSpec((Gpb, TB, GF), lambda g: (g, 0, 0)),
        pl.BlockSpec((Gpb, GF, GHp), lambda g: (g, 0, 0)),
    ]
    operands = [obs_g, w_ih0_bd]
    if has_ihr:
        in_specs.append(pl.BlockSpec((Gpb, Lr, GHp, GHp),
                                     lambda g: (g, 0, 0, 0)))
        operands.append(w_ihr_bd)
    in_specs += [
        pl.BlockSpec((Gpb, L, GHp, GHp), lambda g: (g, 0, 0, 0)),
        pl.BlockSpec((Gpb, L, 1, GHp), lambda g: (g, 0, 0, 0)),
        # head weights identical for every group -> constant block index,
        # one DMA total, stays resident across the whole grid.
        pl.BlockSpec((1, GHp, out_lanes), lambda g: (0, 0, 0)),
    ]
    operands += [w_hh_bd, b_bd, w_head_bd]

    scratch = [pltpu.VMEM((TB, GHp), jnp.float32) for _ in range(Gpb)]  # xproj
    if has_ihr:
        scratch += [pltpu.VMEM((TB, GHp), jnp.float32) for _ in range(Gpb)]

    # Explicit VMEM budget (v7x only has 64 MiB physical per TensorCore).
    blocks = [((Gpb, TB, GF), w_dtype),
              ((Gpb, GF, GHp), w_dtype),
              ((Gpb, L, GHp, GHp), w_dtype),
              ((Gpb, L, 1, GHp), jnp.float32),
              ((1, GHp, out_lanes), w_dtype),
              ((Gpb, Bp, out_lanes), jnp.float32)]
    if has_ihr:
        blocks.append(((Gpb, Lr, GHp, GHp), w_dtype))
    est = sum(2 * _vmem_block_bytes(s, d) for s, d in blocks)  # double-buffered
    est += Gpb * (2 if has_ihr else 1) * _vmem_block_bytes((TB, GHp),
                                                           jnp.float32)
    vmem_limit = int(min(64 * 2**20, max(32 * 2**20, 2 * est)))

    kernel = _make_rnn_kernel(L=L, T=T, Bp=Bp, Gpb=Gpb, has_ihr=has_ihr,
                              w_dtype=w_dtype)

    logits_g = pl.pallas_call(
        kernel,
        out_shape=jax.ShapeDtypeStruct((NGp, Bp, out_lanes), jnp.float32),
        grid_spec=pltpu.PrefetchScalarGridSpec(
            num_scalar_prefetch=0,
            grid=(n_steps,),
            in_specs=in_specs,
            out_specs=pl.BlockSpec((Gpb, Bp, out_lanes), lambda g: (g, 0, 0)),
            scratch_shapes=scratch),
        compiler_params=pltpu.CompilerParams(
            # asset-group blocks are independent -> parallel (2 TCs on v7x).
            # TODO(synk): when n_steps is 1/odd on v7x, add a 2nd parallel
            # grid axis splitting the batch so both TensorCores stay busy.
            dimension_semantics=("parallel",),
            vmem_limit_bytes=vmem_limit),
    )(*operands)

    # Unpack fused-head logits: (NGp, Bp, OUTL) -> (B, A).
    feat_logits = jnp.transpose(logits_g[:, :B, :G], (1, 0, 2))
    feat_logits = feat_logits.reshape(B, A_pad)[:, :A]

    last_stocks = last_action[:, 1:].astype(jnp.float32)          # (B, A)
    conv_out = feat_logits + last_stocks * conv_w0 + conv_b       # (B, A)
    # cash_bias is explicitly zeroed in the reference forward -> cash logit 0
    logits = jnp.concatenate(
        [jnp.zeros((B, 1), jnp.float32), conv_out], axis=-1)      # (B, A+1)
    return jax.nn.softmax(logits, axis=-1)


# ----------------------------------------------------------------------------
# Deterministic parameter init (same shapes as the PyTorch module) + packing.
# ----------------------------------------------------------------------------
def init_params(key, *, A, F, H, L):
    ks = jax.random.split(key, 7)
    s = 1.0 / jnp.sqrt(jnp.float32(H))
    u = lambda k, shape: jax.random.uniform(k, shape, jnp.float32, -s, s)
    params = dict(
        w_ih0=u(ks[0], (A, H, F)),        # per-asset layer-0 weight_ih (H, F)
        w_hh=u(ks[2], (A, L, H, H)),      # per-asset weight_hh
        b_ih=u(ks[3], (A, L, H)),
        b_hh=u(ks[4], (A, L, H)),
        conv_w=u(ks[5], (H + 1,)),        # Conv2d(H+1 -> 1, kernel 1x1)
        conv_b=u(ks[6], ()),
    )
    if L > 1:
        params["w_ihr"] = u(ks[1], (A, L - 1, H, H))   # layers >= 1 weight_ih
    return params


def pack_params(raw, *, param_dtype=jnp.bfloat16, pack_lanes=None):
    """Build asset-group block-diagonal weights for the packed kernel.
    Matmul operands are cast to `param_dtype` (bf16 by default); biases stay
    f32 (accumulation, bias add and tanh are f32 inside the kernel)."""
    w_ih0, w_hh = raw["w_ih0"], raw["w_hh"]
    b = raw["b_ih"] + raw["b_hh"]                   # combined bias
    conv_w, conv_b = raw["conv_w"], raw["conv_b"]
    A, H, F = w_ih0.shape
    L = w_hh.shape[1]
    has_ihr = L > 1
    Lr = L - 1

    if pack_lanes is None:
        pack_lanes = _default_pack_lanes(A, H)

    G = min(A, max(1, pack_lanes // H))             # assets per group
    NG_raw = -(-A // G)
    Gpb = min(GROUPS_PER_STEP, NG_raw)              # groups per grid step
    NGp = _round_up(NG_raw, Gpb)
    A_pad = NGp * G
    GH = G * H
    GHp = max(_round_up(GH, LANE), LANE)            # packed hidden width
    out_lanes = max(LANE, _round_up(G, LANE))       # lane-dense head output

    def pad_assets(x):
        pad = [(0, A_pad - A)] + [(0, 0)] * (x.ndim - 1)
        return jnp.pad(x, pad)

    w_ih0_g = pad_assets(w_ih0).reshape(NGp, G, H, F)
    w_hh_g = pad_assets(w_hh).reshape(NGp, G, L, H, H)
    b_g = pad_assets(b).reshape(NGp, G, L, H)

    w_ih0_bd = jnp.zeros((NGp, G * F, GHp), jnp.float32)
    w_hh_bd = jnp.zeros((NGp, L, GHp, GHp), jnp.float32)
    b_bd = jnp.zeros((NGp, L, 1, GHp), jnp.float32)
    w_head_bd = jnp.zeros((1, GHp, out_lanes), jnp.float32)
    if has_ihr:
        w_ihr_g = pad_assets(raw["w_ihr"]).reshape(NGp, G, Lr, H, H)
        w_ihr_bd = jnp.zeros((NGp, Lr, GHp, GHp), jnp.float32)

    for i in range(G):
        c0, c1 = i * H, (i + 1) * H
        w_ih0_bd = w_ih0_bd.at[:, i * F:(i + 1) * F, c0:c1].set(
            jnp.transpose(w_ih0_g[:, i], (0, 2, 1)))          # (NGp, F, H)
        w_hh_bd = w_hh_bd.at[:, :, c0:c1, c0:c1].set(
            jnp.transpose(w_hh_g[:, i], (0, 1, 3, 2)))        # (NGp, L, H, H)
        b_bd = b_bd.at[:, :, 0, c0:c1].set(b_g[:, i])
        w_head_bd = w_head_bd.at[0, c0:c1, i].set(conv_w[1:])
        if has_ihr:
            w_ihr_bd = w_ihr_bd.at[:, :, c0:c1, c0:c1].set(
                jnp.transpose(w_ihr_g[:, i], (0, 1, 3, 2)))

    packed = dict(
        w_ih0_bd=w_ih0_bd.astype(param_dtype),
        w_hh_bd=w_hh_bd.astype(param_dtype),
        b_bd=b_bd,                                  # bias stays f32
        w_head_bd=w_head_bd.astype(param_dtype),
        conv_w0=conv_w[0], conv_b=conv_b)
    if has_ihr:
        packed["w_ihr_bd"] = w_ihr_bd.astype(param_dtype)
    return packed


# ----------------------------------------------------------------------------
# Pure-JAX reference (mirrors the PyTorch forward exactly) for verification.
# ----------------------------------------------------------------------------
def reference_forward(observation, last_action, raw):
    B, F, A, T = observation.shape
    w_ih0, w_hh = raw["w_ih0"], raw["w_hh"]
    w_ihr = raw.get("w_ihr")
    b_ih, b_hh = raw["b_ih"], raw["b_hh"]
    conv_w, conv_b = raw["conv_w"], raw["conv_b"]
    L = w_hh.shape[1]
    H = w_hh.shape[-1]

    feats = []
    for a in range(A):
        layer_in = jnp.transpose(observation[:, :, a, :], (0, 2, 1))  # (B,T,F)
        h = None
        for l in range(L):
            Wih = w_ih0[a] if l == 0 else w_ihr[a, l - 1]
            Whh = w_hh[a, l]
            h = jnp.zeros((B, H), jnp.float32)
            outs = []
            for t in range(T):
                h = jnp.tanh(layer_in[:, t] @ Wih.T + b_ih[a, l]
                             + h @ Whh.T + b_hh[a, l])
                outs.append(h)
            layer_in = jnp.stack(outs, axis=1)                        # (B,T,H)
        feats.append(h)                                                # (B,H)
    feats = jnp.stack(feats, axis=1)                                   # (B,A,H)

    last_stocks = last_action[:, 1:]                                   # (B,A)
    conv_out = (last_stocks * conv_w[0]
                + jnp.einsum("bah,h->ba", feats, conv_w[1:])
                + conv_b)                                              # (B,A)
    logits = jnp.concatenate(
        [jnp.zeros((B, 1), jnp.float32), conv_out], axis=-1)           # cash=0
    return jax.nn.softmax(logits, axis=-1)


# ----------------------------------------------------------------------------
if __name__ == "__main__":
    # Small shapes consistent with the module's forward.
    B = 2      # batch
    F = 3      # initial_features
    A = 4      # portfolio_size (number of stocks; output has A+1 entries)
    T = 8      # time window
    H = 16     # rec_final_features
    L = 2      # rec_num_layers

    key = jax.random.PRNGKey(0)
    k_obs, k_act, k_par = jax.random.split(key, 3)

    observation = jax.random.normal(k_obs, (B, F, A, T), dtype=jnp.float32)
    last_action_raw = jax.random.uniform(k_act, (B, A + 1), dtype=jnp.float32)
    last_action = last_action_raw / jnp.sum(last_action_raw, axis=-1,
                                            keepdims=True)

    raw_params = init_params(k_par, A=A, F=F, H=H, L=L)
    ref = reference_forward(observation, last_action, raw_params)

    # 1) f32 packed weights: tight numerical check of the kernel semantics.
    packed_f32 = pack_params(raw_params, param_dtype=jnp.float32)
    out_f32 = jax.block_until_ready(
        eiie_recurrent_forward(observation, last_action, packed_f32))
    assert out_f32.shape == (B, A + 1)
    assert jnp.allclose(jnp.sum(out_f32, axis=-1), 1.0, atol=1e-5)
    assert jnp.allclose(out_f32, ref, rtol=1e-3, atol=1e-4), (out_f32, ref)

    # 2) bf16 packed weights/obs (default perf config): f32 accumulation and
    #    f32 tanh are kept; the looser tolerance only reflects bf16 rounding
    #    of the parameters themselves relative to the f32 reference.
    packed_bf16 = pack_params(raw_params, param_dtype=jnp.bfloat16)
    out_bf16 = jax.block_until_ready(
        eiie_recurrent_forward(observation, last_action, packed_bf16))
    assert out_bf16.shape == (B, A + 1)
    assert jnp.allclose(jnp.sum(out_bf16, axis=-1), 1.0, atol=1e-5)
    assert jnp.allclose(out_bf16, ref, rtol=3e-2, atol=3e-3), (out_bf16, ref)

    print("KERNEL_OK")
</pallas_src>

<mosaic_0001>
module attributes {stable_mosaic.version = 11 : i64} {
  func.func @kernel(%arg0: i32, %arg1: memref<1x64x12xf32, #tpu.memory_space<vmem>>, %arg2: memref<1x12x128xf32, #tpu.memory_space<vmem>>, %arg3: memref<1x1x128x128xf32, #tpu.memory_space<vmem>>, %arg4: memref<1x2x128x128xf32, #tpu.memory_space<vmem>>, %arg5: memref<1x2x1x128xf32, #tpu.memory_space<vmem>>, %arg6: memref<1x128x128xf32, #tpu.memory_space<vmem>>, %arg7: memref<1x8x128xf32, #tpu.memory_space<vmem>>, %arg8: memref<64x128xf32, #tpu.memory_space<vmem>>, %arg9: memref<64x128xf32, #tpu.memory_space<vmem>>) attributes {dimension_semantics = [#tpu.dimension_semantics<parallel>], iteration_bounds = array<i64: 1>, scalar_prefetch = 0 : i64, scratch_operands = 2 : i64, tpu.core_type = #tpu.core_type<tc>, window_params = [{transform_indices = @transform_0, window_bounds = array<i64: 1, 64, 12>}, {transform_indices = @transform_1, window_bounds = array<i64: 1, 12, 128>}, {transform_indices = @transform_2, window_bounds = array<i64: 1, 1, 128, 128>}, {transform_indices = @transform_3, window_bounds = array<i64: 1, 2, 128, 128>}, {transform_indices = @transform_4, window_bounds = array<i64: 1, 2, 1, 128>}, {pipeline_mode = #tpu.pipeline_mode<synchronous>, transform_indices = @transform_5, window_bounds = array<i64: 1, 128, 128>}, {transform_indices = @transform_6, window_bounds = array<i64: 1, 8, 128>}]} {
    %c0 = arith.constant 0 : index
    %c0_0 = arith.constant 0 : index
    %c0_1 = arith.constant 0 : index
    %0 = vector.load %arg1[%c0, %c0_0, %c0_1] : memref<1x64x12xf32, #tpu.memory_space<vmem>>, vector<1x64x12xf32>
    %1 = vector.shape_cast %0 : vector<1x64x12xf32> to vector<64x12xf32>
    %c0_2 = arith.constant 0 : index
    %c0_3 = arith.constant 0 : index
    %c0_4 = arith.constant 0 : index
    %2 = vector.load %arg2[%c0_2, %c0_3, %c0_4] : memref<1x12x128xf32, #tpu.memory_space<vmem>>, vector<1x12x128xf32>
    %3 = vector.shape_cast %2 : vector<1x12x128xf32> to vector<12x128xf32>
    %cst = arith.constant dense<0.000000e+00> : vector<64x128xf32>
    %4 = tpu.matmul %1, %3, %cst {dimension_numbers = #tpu.dot_dimension_numbers<[1], [0], [0], [1], [0, 0, 1, 1], [], []>} : vector<64x12xf32>, vector<12x128xf32>, vector<64x128xf32> -> vector<64x128xf32>
    %c0_5 = arith.constant 0 : index
    %c0_6 = arith.constant 0 : index
    %c0_7 = arith.constant 0 : index
    %c0_8 = arith.constant 0 : index
    %5 = vector.load %arg5[%c0_5, %c0_6, %c0_7, %c0_8] : memref<1x2x1x128xf32, #tpu.memory_space<vmem>>, vector<1x1x1x128xf32>
    %6 = vector.shape_cast %5 : vector<1x1x1x128xf32> to vector<1x128xf32>
    %7 = vector.broadcast %6 : vector<1x128xf32> to vector<64x128xf32>
    %8 = arith.addf %4, %7 : vector<64x128xf32>
    %c0_9 = arith.constant 0 : index
    %c0_10 = arith.constant 0 : index
    %9 = vector.load %arg8[%c0_9, %c0_10] : memref<64x128xf32, #tpu.memory_space<vmem>>, vector<64x128xf32>
    tpu.vector_store %arg8[%c0_9, %c0_10], %8 {strides = array<i32>} : memref<64x128xf32, #tpu.memory_space<vmem>>, vector<64x128xf32>,
    %cst_11 = arith.constant 0.000000e+00 : f32
    %10 = vector.broadcast %cst_11 : f32 to vector<8x128xf32>
    %c0_i32 = arith.constant 0 : i32
    %c8_i32 = arith.constant 8 : i32
    %11 = arith.muli %c0_i32, %c8_i32 : i32
    %12 = tpu.assume_multiple %11, 8 : i32
    %13 = arith.index_cast %12 : i32 to index
    %c0_12 = arith.constant 0 : index
    %14 = vector.load %arg8[%13, %c0_12] : memref<64x128xf32, #tpu.memory_space<vmem>>, vector<8x128xf32>
    %c0_13 = arith.constant 0 : index
    %c0_14 = arith.constant 0 : index
    %c0_15 = arith.constant 0 : index
    %c0_16 = arith.constant 0 : index
    %15 = vector.load %arg4[%c0_13, %c0_14, %c0_15, %c0_16] : memref<1x2x128x128xf32, #tpu.memory_space<vmem>>, vector<1x1x128x128xf32>
    %16 = vector.shape_cast %15 : vector<1x1x128x128xf32> to vector<128x128xf32>
    %cst_17 = arith.constant dense<0.000000e+00> : vector<8x128xf32>
    %17 = tpu.matmul %10, %16, %cst_17 {dimension_numbers = #tpu.dot_dimension_numbers<[1], [0], [0], [1], [0, 0, 1, 1], [], []>} : vector<8x128xf32>, vector<128x128xf32>, vector<8x128xf32> -> vector<8x128xf32>
    %18 = arith.addf %14, %17 : vector<8x128xf32>
    %19 = math.tanh %18 : vector<8x128xf32>
    %20 = arith.index_cast %12 : i32 to index
    %c0_18 = arith.constant 0 : index
    %21 = vector.load %arg9[%20, %c0_18] : memref<64x128xf32, #tpu.memory_space<vmem>>, vector<8x128xf32>
    tpu.vector_store %arg9[%20, %c0_18], %19 {strides = array<i32>} : memref<64x128xf32, #tpu.memory_space<vmem>>, vector<8x128xf32>,
    %c1_i32 = arith.constant 1 : i32
    %c8_i32_19 = arith.constant 8 : i32
    %22 = arith.muli %c1_i32, %c8_i32_19 : i32
    %23 = tpu.assume_multiple %22, 8 : i32
    %24 = arith.index_cast %23 : i32 to index
    %c0_20 = arith.constant 0 : index
    %25 = vector.load %arg8[%24, %c0_20] : memref<64x128xf32, #tpu.memory_space<vmem>>, vector<8x128xf32>
    %c0_21 = arith.constant 0 : index
    %c0_22 = arith.constant 0 : index
    %c0_23 = arith.constant 0 : index
    %c0_24 = arith.constant 0 : index
    %26 = vector.load %arg4[%c0_21, %c0_22, %c0_23, %c0_24] : memref<1x2x128x128xf32, #tpu.memory_space<vmem>>, vector<1x1x128x128xf32>
    %27 = vector.shape_cast %26 : vector<1x1x128x128xf32> to vector<128x128xf32>
    %cst_25 = arith.constant dense<0.000000e+00> : vector<8x128xf32>
    %28 = tpu.matmul %19, %27, %cst_25 {dimension_numbers = #tpu.dot_dimension_numbers<[1], [0], [0], [1], [0, 0, 1, 1], [], []>} : vector<8x128xf32>, vector<128x128xf32>, vector<8x128xf32> -> vector<8x128xf32>
    %29 = arith.addf %25, %28 : vector<8x128xf32>
    %30 = math.tanh %29 : vector<8x128xf32>
    %31 = arith.index_cast %23 : i32 to index
    %c0_26 = arith.constant 0 : index
    %32 = vector.load %arg9[%31, %c0_26] : memref<64x128xf32, #tpu.memory_space<vmem>>, vector<8x128xf32>
    tpu.vector_store %arg9[%31, %c0_26], %30 {strides = array<i32>} : memref<64x128xf32, #tpu.memory_space<vmem>>, vector<8x128xf32>,
    %c2_i32 = arith.constant 2 : i32
    %c8_i32_27 = arith.constant 8 : i32
    %33 = arith.muli %c2_i32, %c8_i32_27 : i32
    %34 = tpu.assume_multiple %33, 8 : i32
    %35 = arith.index_cast %34 : i32 to index
    %c0_28 = arith.constant 0 : index
    %36 = vector.load %arg8[%35, %c0_28] : memref<64x128xf32, #tpu.memory_space<vmem>>, vector<8x128xf32>
    %c0_29 = arith.constant 0 : index
    %c0_30 = arith.constant 0 : index
    %c0_31 = arith.constant 0 : index
    %c0_32 = arith.constant 0 : index
    %37 = vector.load %arg4[%c0_29, %c0_30, %c0_31, %c0_32] : memref<1x2x128x128xf32, #tpu.memory_space<vmem>>, vector<1x1x128x128xf32>
    %38 = vector.shape_cast %37 : vector<1x1x128x128xf32> to vector<128x128xf32>
    %cst_33 = arith.constant dense<0.000000e+00> : vector<8x128xf32>
    %39 = tpu.matmul %30, %38, %cst_33 {dimension_numbers = #tpu.dot_dimension_numbers<[1], [0], [0], [1], [0, 0, 1, 1], [], []>} : vector<8x128xf32>, vector<128x128xf32>, vector<8x128xf32> -> vector<8x128xf32>
    %40 = arith.addf %36, %39 : vector<8x128xf32>
    %41 = math.tanh %40 : vector<8x128xf32>
    %42 = arith.index_cast %34 : i32 to index
    %c0_34 = arith.constant 0 : index
    %43 = vector.load %arg9[%42, %c0_34] : memref<64x128xf32, #tpu.memory_space<vmem>>, vector<8x128xf32>
    tpu.vector_store %arg9[%42, %c0_34], %41 {strides = array<i32>} : memref<64x128xf32, #tpu.memory_space<vmem>>, vector<8x128xf32>,
    %c3_i32 = arith.constant 3 : i32
    %c8_i32_35 = arith.constant 8 : i32
    %44 = arith.muli %c3_i32, %c8_i32_35 : i32
    %45 = tpu.assume_multiple %44, 8 : i32
    %46 = arith.index_cast %45 : i32 to index
    %c0_36 = arith.constant 0 : index
    %47 = vector.load %arg8[%46, %c0_36] : memref<64x128xf32, #tpu.memory_space<vmem>>, vector<8x128xf32>
    %c0_37 = arith.constant 0 : index
    %c0_38 = arith.constant 0 : index
    %c0_39 = arith.constant 0 : index
    %c0_40 = arith.constant 0 : index
    %48 = vector.load %arg4[%c0_37, %c0_38, %c0_39, %c0_40] : memref<1x2x128x128xf32, #tpu.memory_space<vmem>>, vector<1x1x128x128xf32>
    %49 = vector.shape_cast %48 : vector<1x1x128x128xf32> to vector<128x128xf32>
    %cst_41 = arith.constant dense<0.000000e+00> : vector<8x128xf32>
    %50 = tpu.matmul %41, %49, %cst_41 {dimension_numbers = #tpu.dot_dimension_numbers<[1], [0], [0], [1], [0, 0, 1, 1], [], []>} : vector<8x128xf32>, vector<128x128xf32>, vector<8x128xf32> -> vector<8x128xf32>
    %51 = arith.addf %47, %50 : vector<8x128xf32>
    %52 = math.tanh %51 : vector<8x128xf32>
    %53 = arith.index_cast %45 : i32 to index
    %c0_42 = arith.constant 0 : index
    %54 = vector.load %arg9[%53, %c0_42] : memref<64x128xf32, #tpu.memory_space<vmem>>, vector<8x128xf32>
    tpu.vector_store %arg9[%53, %c0_42], %52 {strides = array<i32>} : memref<64x128xf32, #tpu.memory_space<vmem>>, vector<8x128xf32>,
    %c4_i32 = arith.constant 4 : i32
    %c8_i32_43 = arith.constant 8 : i32
    %55 = arith.muli %c4_i32, %c8_i32_43 : i32
    %56 = tpu.assume_multiple %55, 8 : i32
    %57 = arith.index_cast %56 : i32 to index
    %c0_44 = arith.constant 0 : index
    %58 = vector.load %arg8[%57, %c0_44] : memref<64x128xf32, #tpu.memory_space<vmem>>, vector<8x128xf32>
    %c0_45 = arith.constant 0 : index
    %c0_46 = arith.constant 0 : index
    %c0_47 = arith.constant 0 : index
    %c0_48 = arith.constant 0 : index
    %59 = vector.load %arg4[%c0_45, %c0_46, %c0_47, %c0_48] : memref<1x2x128x128xf32, #tpu.memory_space<vmem>>, vector<1x1x128x128xf32>
    %60 = vector.shape_cast %59 : vector<1x1x128x128xf32> to vector<128x128xf32>
    %cst_49 = arith.constant dense<0.000000e+00> : vector<8x128xf32>
    %61 = tpu.matmul %52, %60, %cst_49 {dimension_numbers = #tpu.dot_dimension_numbers<[1], [0], [0], [1], [0, 0, 1, 1], [], []>} : vector<8x128xf32>, vector<128x128xf32>, vector<8x128xf32> -> vector<8x128xf32>
    %62 = arith.addf %58, %61 : vector<8x128xf32>
    %63 = math.tanh %62 : vector<8x128xf32>
    %64 = arith.index_cast %56 : i32 to index
    %c0_50 = arith.constant 0 : index
    %65 = vector.load %arg9[%64, %c0_50] : memref<64x128xf32, #tpu.memory_space<vmem>>, vector<8x128xf32>
    tpu.vector_store %arg9[%64, %c0_50], %63 {strides = array<i32>} : memref<64x128xf32, #tpu.memory_space<vmem>>, vector<8x128xf32>,
    %c5_i32 = arith.constant 5 : i32
    %c8_i32_51 = arith.constant 8 : i32
    %66 = arith.muli %c5_i32, %c8_i32_51 : i32
    %67 = tpu.assume_multiple %66, 8 : i32
    %68 = arith.index_cast %67 : i32 to index
    %c0_52 = arith.constant 0 : index
    %69 = vector.load %arg8[%68, %c0_52] : memref<64x128xf32, #tpu.memory_space<vmem>>, vector<8x128xf32>
    %c0_53 = arith.constant 0 : index
    %c0_54 = arith.constant 0 : index
    %c0_55 = arith.constant 0 : index
    %c0_56 = arith.constant 0 : index
    %70 = vector.load %arg4[%c0_53, %c0_54, %c0_55, %c0_56] : memref<1x2x128x128xf32, #tpu.memory_space<vmem>>, vector<1x1x128x128xf32>
    %71 = vector.shape_cast %70 : vector<1x1x128x128xf32> to vector<128x128xf32>
    %cst_57 = arith.constant dense<0.000000e+00> : vector<8x128xf32>
    %72 = tpu.matmul %63, %71, %cst_57 {dimension_numbers = #tpu.dot_dimension_numbers<[1], [0], [0], [1], [0, 0, 1, 1], [], []>} : vector<8x128xf32>, vector<128x128xf32>, vector<8x128xf32> -> vector<8x128xf32>
    %73 = arith.addf %69, %72 : vector<8x128xf32>
    %74 = math.tanh %73 : vector<8x128xf32>
    %75 = arith.index_cast %67 : i32 to index
    %c0_58 = arith.constant 0 : index
    %76 = vector.load %arg9[%75, %c0_58] : memref<64x128xf32, #tpu.memory_space<vmem>>, vector<8x128xf32>
    tpu.vector_store %arg9[%75, %c0_58], %74 {strides = array<i32>} : memref<64x128xf32, #tpu.memory_space<vmem>>, vector<8x128xf32>,
    %c6_i32 = arith.constant 6 : i32
    %c8_i32_59 = arith.constant 8 : i32
    %77 = arith.muli %c6_i32, %c8_i32_59 : i32
    %78 = tpu.assume_multiple %77, 8 : i32
    %79 = arith.index_cast %78 : i32 to index
    %c0_60 = arith.constant 0 : index
    %80 = vector.load %arg8[%79, %c0_60] : memref<64x128xf32, #tpu.memory_space<vmem>>, vector<8x128xf32>
    %c0_61 = arith.constant 0 : index
    %c0_62 = arith.constant 0 : index
    %c0_63 = arith.constant 0 : index
    %c0_64 = arith.constant 0 : index
    %81 = vector.load %arg4[%c0_61, %c0_62, %c0_63, %c0_64] : memref<1x2x128x128xf32, #tpu.memory_space<vmem>>, vector<1x1x128x128xf32>
    %82 = vector.shape_cast %81 : vector<1x1x128x128xf32> to vector<128x128xf32>
    %cst_65 = arith.constant dense<0.000000e+00> : vector<8x128xf32>
    %83 = tpu.matmul %74, %82, %cst_65 {dimension_numbers = #tpu.dot_dimension_numbers<[1], [0], [0], [1], [0, 0, 1, 1], [], []>} : vector<8x128xf32>, vector<128x128xf32>, vector<8x128xf32> -> vector<8x128xf32>
    %84 = arith.addf %80, %83 : vector<8x128xf32>
    %85 = math.tanh %84 : vector<8x128xf32>
    %86 = arith.index_cast %78 : i32 to index
    %c0_66 = arith.constant 0 : index
    %87 = vector.load %arg9[%86, %c0_66] : memref<64x128xf32, #tpu.memory_space<vmem>>, vector<8x128xf32>
    tpu.vector_store %arg9[%86, %c0_66], %85 {strides = array<i32>} : memref<64x128xf32, #tpu.memory_space<vmem>>, vector<8x128xf32>,
    %c7_i32 = arith.constant 7 : i32
    %c8_i32_67 = arith.constant 8 : i32
    %88 = arith.muli %c7_i32, %c8_i32_67 : i32
    %89 = tpu.assume_multiple %88, 8 : i32
    %90 = arith.index_cast %89 : i32 to index
    %c0_68 = arith.constant 0 : index
    %91 = vector.load %arg8[%90, %c0_68] : memref<64x128xf32, #tpu.memory_space<vmem>>, vector<8x128xf32>
    %c0_69 = arith.constant 0 : index
    %c0_70 = arith.constant 0 : index
    %c0_71 = arith.constant 0 : index
    %c0_72 = arith.constant 0 : index
    %92 = vector.load %arg4[%c0_69, %c0_70, %c0_71, %c0_72] : memref<1x2x128x128xf32, #tpu.memory_space<vmem>>, vector<1x1x128x128xf32>
    %93 = vector.shape_cast %92 : vector<1x1x128x128xf32> to vector<128x128xf32>
    %cst_73 = arith.constant dense<0.000000e+00> : vector<8x128xf32>
    %94 = tpu.matmul %85, %93, %cst_73 {dimension_numbers = #tpu.dot_dimension_numbers<[1], [0], [0], [1], [0, 0, 1, 1], [], []>} : vector<8x128xf32>, vector<128x128xf32>, vector<8x128xf32> -> vector<8x128xf32>
    %95 = arith.addf %91, %94 : vector<8x128xf32>
    %96 = math.tanh %95 : vector<8x128xf32>
    %97 = arith.index_cast %89 : i32 to index
    %c0_74 = arith.constant 0 : index
    %98 = vector.load %arg9[%97, %c0_74] : memref<64x128xf32, #tpu.memory_space<vmem>>, vector<8x128xf32>
    tpu.vector_store %arg9[%97, %c0_74], %96 {strides = array<i32>} : memref<64x128xf32, #tpu.memory_space<vmem>>, vector<8x128xf32>,
    %c8_i32_75 = arith.constant 8 : i32
    %c0_76 = arith.constant 0 : index
    %c0_77 = arith.constant 0 : index
    %99 = vector.load %arg9[%c0_76, %c0_77] : memref<64x128xf32, #tpu.memory_space<vmem>>, vector<64x128xf32>
    %c0_78 = arith.constant 0 : index
    %c0_79 = arith.constant 0 : index
    %c0_80 = arith.constant 0 : index
    %c0_81 = arith.constant 0 : index
    %100 = vector.load %arg3[%c0_78, %c0_79, %c0_80, %c0_81] : memref<1x1x128x128xf32, #tpu.memory_space<vmem>>, vector<1x1x128x128xf32>
    %101 = vector.shape_cast %100 : vector<1x1x128x128xf32> to vector<128x128xf32>
    %cst_82 = arith.constant dense<0.000000e+00> : vector<64x128xf32>
    %102 = tpu.matmul %99, %101, %cst_82 {dimension_numbers = #tpu.dot_dimension_numbers<[1], [0], [0], [1], [0, 0, 1, 1], [], []>} : vector<64x128xf32>, vector<128x128xf32>, vector<64x128xf32> -> vector<64x128xf32>
    %c0_83 = arith.constant 0 : index
    %c1 = arith.constant 1 : index
    %c0_84 = arith.constant 0 : index
    %c0_85 = arith.constant 0 : index
    %103 = vector.load %arg5[%c0_83, %c1, %c0_84, %c0_85] : memref<1x2x1x128xf32, #tpu.memory_space<vmem>>, vector<1x1x1x128xf32>
    %104 = vector.shape_cast %103 : vector<1x1x1x128xf32> to vector<1x128xf32>
    %105 = vector.broadcast %104 : vector<1x128xf32> to vector<64x128xf32>
    %106 = arith.addf %102, %105 : vector<64x128xf32>
    %c0_86 = arith.constant 0 : index
    %c0_87 = arith.constant 0 : index
    %107 = vector.load %arg8[%c0_86, %c0_87] : memref<64x128xf32, #tpu.memory_space<vmem>>, vector<64x128xf32>
    tpu.vector_store %arg8[%c0_86, %c0_87], %106 {strides = array<i32>} : memref<64x128xf32, #tpu.memory_space<vmem>>, vector<64x128xf32>,
    %cst_88 = arith.constant 0.000000e+00 : f32
    %108 = vector.broadcast %cst_88 : f32 to vector<8x128xf32>
    %c0_i32_89 = arith.constant 0 : i32
    %c8_i32_90 = arith.constant 8 : i32
    %109 = arith.muli %c0_i32_89, %c8_i32_90 : i32
    %110 = tpu.assume_multiple %109, 8 : i32
    %111 = arith.index_cast %110 : i32 to index
    %c0_91 = arith.constant 0 : index
    %112 = vector.load %arg8[%111, %c0_91] : memref<64x128xf32, #tpu.memory_space<vmem>>, vector<8x128xf32>
    %c0_92 = arith.constant 0 : index
    %c1_93 = arith.constant 1 : index
    %c0_94 = arith.constant 0 : index
    %c0_95 = arith.constant 0 : index
    %113 = vector.load %arg4[%c0_92, %c1_93, %c0_94, %c0_95] : memref<1x2x128x128xf32, #tpu.memory_space<vmem>>, vector<1x1x128x128xf32>
    %114 = vector.shape_cast %113 : vector<1x1x128x128xf32> to vector<128x128xf32>
    %cst_96 = arith.constant dense<0.000000e+00> : vector<8x128xf32>
    %115 = tpu.matmul %108, %114, %cst_96 {dimension_numbers = #tpu.dot_dimension_numbers<[1], [0], [0], [1], [0, 0, 1, 1], [], []>} : vector<8x128xf32>, vector<128x128xf32>, vector<8x128xf32> -> vector<8x128xf32>
    %116 = arith.addf %112, %115 : vector<8x128xf32>
    %117 = math.tanh %116 : vector<8x128xf32>
    %c1_i32_97 = arith.constant 1 : i32
    %c8_i32_98 = arith.constant 8 : i32
    %118 = arith.muli %c1_i32_97, %c8_i32_98 : i32
    %119 = tpu.assume_multiple %118, 8 : i32
    %120 = arith.index_cast %119 : i32 to index
    %c0_99 = arith.constant 0 : index
    %121 = vector.load %arg8[%120, %c0_99] : memref<64x128xf32, #tpu.memory_space<vmem>>, vector<8x128xf32>
    %c0_100 = arith.constant 0 : index
    %c1_101 = arith.constant 1 : index
    %c0_102 = arith.constant 0 : index
    %c0_103 = arith.constant 0 : index
    %122 = vector.load %arg4[%c0_100, %c1_101, %c0_102, %c0_103] : memref<1x2x128x128xf32, #tpu.memory_space<vmem>>, vector<1x1x128x128xf32>
    %123 = vector.shape_cast %122 : vector<1x1x128x128xf32> to vector<128x128xf32>
    %cst_104 = arith.constant dense<0.000000e+00> : vector<8x128xf32>
    %124 = tpu.matmul %117, %123, %cst_104 {dimension_numbers = #tpu.dot_dimension_numbers<[1], [0], [0], [1], [0, 0, 1, 1], [], []>} : vector<8x128xf32>, vector<128x128xf32>, vector<8x128xf32> -> vector<8x128xf32>
    %125 = arith.addf %121, %124 : vector<8x128xf32>
    %126 = math.tanh %125 : vector<8x128xf32>
    %c2_i32_105 = arith.constant 2 : i32
    %c8_i32_106 = arith.constant 8 : i32
    %127 = arith.muli %c2_i32_105, %c8_i32_106 : i32
    %128 = tpu.assume_multiple %127, 8 : i32
    %129 = arith.index_cast %128 : i32 to index
    %c0_107 = arith.constant 0 : index
    %130 = vector.load %arg8[%129, %c0_107] : memref<64x128xf32, #tpu.memory_space<vmem>>, vector<8x128xf32>
    %c0_108 = arith.constant 0 : index
    %c1_109 = arith.constant 1 : index
    %c0_110 = arith.constant 0 : index
    %c0_111 = arith.constant 0 : index
    %131 = vector.load %arg4[%c0_108, %c1_109, %c0_110, %c0_111] : memref<1x2x128x128xf32, #tpu.memory_space<vmem>>, vector<1x1x128x128xf32>
    %132 = vector.shape_cast %131 : vector<1x1x128x128xf32> to vector<128x128xf32>
    %cst_112 = arith.constant dense<0.000000e+00> : vector<8x128xf32>
    %133 = tpu.matmul %126, %132, %cst_112 {dimension_numbers = #tpu.dot_dimension_numbers<[1], [0], [0], [1], [0, 0, 1, 1], [], []>} : vector<8x128xf32>, vector<128x128xf32>, vector<8x128xf32> -> vector<8x128xf32>
    %134 = arith.addf %130, %133 : vector<8x128xf32>
    %135 = math.tanh %134 : vector<8x128xf32>
    %c3_i32_113 = arith.constant 3 : i32
    %c8_i32_114 = arith.constant 8 : i32
    %136 = arith.muli %c3_i32_113, %c8_i32_114 : i32
    %137 = tpu.assume_multiple %136, 8 : i32
    %138 = arith.index_cast %137 : i32 to index
    %c0_115 = arith.constant 0 : index
    %139 = vector.load %arg8[%138, %c0_115] : memref<64x128xf32, #tpu.memory_space<vmem>>, vector<8x128xf32>
    %c0_116 = arith.constant 0 : index
    %c1_117 = arith.constant 1 : index
    %c0_118 = arith.constant 0 : index
    %c0_119 = arith.constant 0 : index
    %140 = vector.load %arg4[%c0_116, %c1_117, %c0_118, %c0_119] : memref<1x2x128x128xf32, #tpu.memory_space<vmem>>, vector<1x1x128x128xf32>
    %141 = vector.shape_cast %140 : vector<1x1x128x128xf32> to vector<128x128xf32>
    %cst_120 = arith.constant dense<0.000000e+00> : vector<8x128xf32>
    %142 = tpu.matmul %135, %141, %cst_120 {dimension_numbers = #tpu.dot_dimension_numbers<[1], [0], [0], [1], [0, 0, 1, 1], [], []>} : vector<8x128xf32>, vector<128x128xf32>, vector<8x128xf32> -> vector<8x128xf32>
    %143 = arith.addf %139, %142 : vector<8x128xf32>
    %144 = math.tanh %143 : vector<8x128xf32>
    %c4_i32_121 = arith.constant 4 : i32
    %c8_i32_122 = arith.constant 8 : i32
    %145 = arith.muli %c4_i32_121, %c8_i32_122 : i32
    %146 = tpu.assume_multiple %145, 8 : i32
    %147 = arith.index_cast %146 : i32 to index
    %c0_123 = arith.constant 0 : index
    %148 = vector.load %arg8[%147, %c0_123] : memref<64x128xf32, #tpu.memory_space<vmem>>, vector<8x128xf32>
    %c0_124 = arith.constant 0 : index
    %c1_125 = arith.constant 1 : index
    %c0_126 = arith.constant 0 : index
    %c0_127 = arith.constant 0 : index
    %149 = vector.load %arg4[%c0_124, %c1_125, %c0_126, %c0_127] : memref<1x2x128x128xf32, #tpu.memory_space<vmem>>, vector<1x1x128x128xf32>
    %150 = vector.shape_cast %149 : vector<1x1x128x128xf32> to vector<128x128xf32>
    %cst_128 = arith.constant dense<0.000000e+00> : vector<8x128xf32>
    %151 = tpu.matmul %144, %150, %cst_128 {dimension_numbers = #tpu.dot_dimension_numbers<[1], [0], [0], [1], [0, 0, 1, 1], [], []>} : vector<8x128xf32>, vector<128x128xf32>, vector<8x128xf32> -> vector<8x128xf32>
    %152 = arith.addf %148, %151 : vector<8x128xf32>
    %153 = math.tanh %152 : vector<8x128xf32>
    %c5_i32_129 = arith.constant 5 : i32
    %c8_i32_130 = arith.constant 8 : i32
    %154 = arith.muli %c5_i32_129, %c8_i32_130 : i32
    %155 = tpu.assume_multiple %154, 8 : i32
    %156 = arith.index_cast %155 : i32 to index
    %c0_131 = arith.constant 0 : index
    %157 = vector.load %arg8[%156, %c0_131] : memref<64x128xf32, #tpu.memory_space<vmem>>, vector<8x128xf32>
    %c0_132 = arith.constant 0 : index
    %c1_133 = arith.constant 1 : index
    %c0_134 = arith.constant 0 : index
    %c0_135 = arith.constant 0 : index
    %158 = vector.load %arg4[%c0_132, %c1_133, %c0_134, %c0_135] : memref<1x2x128x128xf32, #tpu.memory_space<vmem>>, vector<1x1x128x128xf32>
    %159 = vector.shape_cast %158 : vector<1x1x128x128xf32> to vector<128x128xf32>
    %cst_136 = arith.constant dense<0.000000e+00> : vector<8x128xf32>
    %160 = tpu.matmul %153, %159, %cst_136 {dimension_numbers = #tpu.dot_dimension_numbers<[1], [0], [0], [1], [0, 0, 1, 1], [], []>} : vector<8x128xf32>, vector<128x128xf32>, vector<8x128xf32> -> vector<8x128xf32>
    %161 = arith.addf %157, %160 : vector<8x128xf32>
    %162 = math.tanh %161 : vector<8x128xf32>
    %c6_i32_137 = arith.constant 6 : i32
    %c8_i32_138 = arith.constant 8 : i32
    %163 = arith.muli %c6_i32_137, %c8_i32_138 : i32
    %164 = tpu.assume_multiple %163, 8 : i32
    %165 = arith.index_cast %164 : i32 to index
    %c0_139 = arith.constant 0 : index
    %166 = vector.load %arg8[%165, %c0_139] : memref<64x128xf32, #tpu.memory_space<vmem>>, vector<8x128xf32>
    %c0_140 = arith.constant 0 : index
    %c1_141 = arith.constant 1 : index
    %c0_142 = arith.constant 0 : index
    %c0_143 = arith.constant 0 : index
    %167 = vector.load %arg4[%c0_140, %c1_141, %c0_142, %c0_143] : memref<1x2x128x128xf32, #tpu.memory_space<vmem>>, vector<1x1x128x128xf32>
    %168 = vector.shape_cast %167 : vector<1x1x128x128xf32> to vector<128x128xf32>
    %cst_144 = arith.constant dense<0.000000e+00> : vector<8x128xf32>
    %169 = tpu.matmul %162, %168, %cst_144 {dimension_numbers = #tpu.dot_dimension_numbers<[1], [0], [0], [1], [0, 0, 1, 1], [], []>} : vector<8x128xf32>, vector<128x128xf32>, vector<8x128xf32> -> vector<8x128xf32>
    %170 = arith.addf %166, %169 : vector<8x128xf32>
    %171 = math.tanh %170 : vector<8x128xf32>
    %c7_i32_145 = arith.constant 7 : i32
    %c8_i32_146 = arith.constant 8 : i32
    %172 = arith.muli %c7_i32_145, %c8_i32_146 : i32
    %173 = tpu.assume_multiple %172, 8 : i32
    %174 = arith.index_cast %173 : i32 to index
    %c0_147 = arith.constant 0 : index
    %175 = vector.load %arg8[%174, %c0_147] : memref<64x128xf32, #tpu.memory_space<vmem>>, vector<8x128xf32>
    %c0_148 = arith.constant 0 : index
    %c1_149 = arith.constant 1 : index
    %c0_150 = arith.constant 0 : index
    %c0_151 = arith.constant 0 : index
    %176 = vector.load %arg4[%c0_148, %c1_149, %c0_150, %c0_151] : memref<1x2x128x128xf32, #tpu.memory_space<vmem>>, vector<1x1x128x128xf32>
    %177 = vector.shape_cast %176 : vector<1x1x128x128xf32> to vector<128x128xf32>
    %cst_152 = arith.constant dense<0.000000e+00> : vector<8x128xf32>
    %178 = tpu.matmul %171, %177, %cst_152 {dimension_numbers = #tpu.dot_dimension_numbers<[1], [0], [0], [1], [0, 0, 1, 1], [], []>} : vector<8x128xf32>, vector<128x128xf32>, vector<8x128xf32> -> vector<8x128xf32>
    %179 = arith.addf %175, %178 : vector<8x128xf32>
    %180 = math.tanh %179 : vector<8x128xf32>
    %c8_i32_153 = arith.constant 8 : i32
    %c0_154 = arith.constant 0 : index
    %c0_155 = arith.constant 0 : index
    %c0_156 = arith.constant 0 : index
    %181 = vector.load %arg6[%c0_154, %c0_155, %c0_156] : memref<1x128x128xf32, #tpu.memory_space<vmem>>, vector<1x128x128xf32>
    %182 = vector.shape_cast %181 : vector<1x128x128xf32> to vector<128x128xf32>
    %cst_157 = arith.constant dense<0.000000e+00> : vector<8x128xf32>
    %183 = tpu.matmul %180, %182, %cst_157 {dimension_numbers = #tpu.dot_dimension_numbers<[1], [0], [0], [1], [0, 0, 1, 1], [], []>} : vector<8x128xf32>, vector<128x128xf32>, vector<8x128xf32> -> vector<8x128xf32>
    %c0_158 = arith.constant 0 : index
    %c0_159 = arith.constant 0 : index
    %c0_160 = arith.constant 0 : index
    %184 = vector.load %arg7[%c0_158, %c0_159, %c0_160] : memref<1x8x128xf32, #tpu.memory_space<vmem>>, vector<1x8x128xf32>
    %185 = vector.shape_cast %184 : vector<1x8x128xf32> to vector<8x128xf32>
    %186 = vector.shape_cast %183 : vector<8x128xf32> to vector<1x8x128xf32>
    tpu.vector_store %arg7[%c0_158, %c0_159, %c0_160], %186 {strides = array<i32>} : memref<1x8x128xf32, #tpu.memory_space<vmem>>, vector<1x8x128xf32>,
    return
  }
  func.func @transform_0(%arg0: i32) -> (i32, i32, i32) {
    %c0_i32 = arith.constant 0 : i32
    %c0_i32_0 = arith.constant 0 : i32
    %c0_i32_1 = arith.constant 0 : i32
    return %arg0, %c0_i32, %c0_i32_0 : i32, i32, i32
  }
  func.func @transform_1(%arg0: i32) -> (i32, i32, i32) {
    %c0_i32 = arith.constant 0 : i32
    %c0_i32_0 = arith.constant 0 : i32
    %c0_i32_1 = arith.constant 0 : i32
    return %arg0, %c0_i32, %c0_i32_0 : i32, i32, i32
  }
  func.func @transform_2(%arg0: i32) -> (i32, i32, i32, i32) {
    %c0_i32 = arith.constant 0 : i32
    %c0_i32_0 = arith.constant 0 : i32
    %c0_i32_1 = arith.constant 0 : i32
    %c0_i32_2 = arith.constant 0 : i32
    return %arg0, %c0_i32, %c0_i32_0, %c0_i32_1 : i32, i32, i32, i32
  }
  func.func @transform_3(%arg0: i32) -> (i32, i32, i32, i32) {
    %c0_i32 = arith.constant 0 : i32
    %c0_i32_0 = arith.constant 0 : i32
    %c0_i32_1 = arith.constant 0 : i32
    %c0_i32_2 = arith.constant 0 : i32
    return %arg0, %c0_i32, %c0_i32_0, %c0_i32_1 : i32, i32, i32, i32
  }
  func.func @transform_4(%arg0: i32) -> (i32, i32, i32, i32) {
    %c0_i32 = arith.constant 0 : i32
    %c0_i32_0 = arith.constant 0 : i32
    %c0_i32_1 = arith.constant 0 : i32
    %c0_i32_2 = arith.constant 0 : i32
    return %arg0, %c0_i32, %c0_i32_0, %c0_i32_1 : i32, i32, i32, i32
  }
  func.func @transform_5(%arg0: i32) -> (i32, i32, i32) {
    %c0_i32 = arith.constant 0 : i32
    %c0_i32_0 = arith.constant 0 : i32
    %c0_i32_1 = arith.constant 0 : i32
    %c0_i32_2 = arith.constant 0 : i32
    return %c0_i32, %c0_i32_0, %c0_i32_1 : i32, i32, i32
  }
  func.func @transform_6(%arg0: i32) -> (i32, i32, i32) {
    %c0_i32 = arith.constant 0 : i32
    %c0_i32_0 = arith.constant 0 : i32
    %c0_i32_1 = arith.constant 0 : i32
    return %arg0, %c0_i32, %c0_i32_0 : i32, i32, i32
  }
}

</mosaic_0001>

<llo_original>
// kernel: eiie_recurrent_forward.1
$region0: #{eiie_recurrent_forward.1}
  #allocation0 [shape = 'u32[]', space=smem, size = 0x4, offset = 0x4, fixed_abs, tag = 'smem constant byte address 0x4 - core index']
  #allocation1 [shape = 'u32[144,128]{1,0:T(1,128)}', space=vmem, size = 0x12000, scoped, tag = 'internal scratch']
  #allocation2 [shape = 'f32[64,128]{1,0:T(8,128)}', space=vmem, size = 0x8000, scoped, tag = 'scratch operand']
  #allocation3 [shape = 'f32[64,128]{1,0:T(8,128)}', space=vmem, size = 0x8000, scoped, tag = 'scratch operand']
  %s0 = inlined_call_operand.vmem [shape: f32[1,64,12], index: 0, kind: input, shape index: {}]
  %s1 = inlined_call_operand.vmem [shape: f32[1,12,128], index: 1, kind: input, shape index: {}]
  %s2 = inlined_call_operand.vmem [shape: f32[1,1,128,128], index: 2, kind: input, shape index: {}]
  %s3 = inlined_call_operand.vmem [shape: f32[1,2,128,128], index: 3, kind: input, shape index: {}]
  %s4 = inlined_call_operand.vmem [shape: f32[1,2,1,128], index: 4, kind: input, shape index: {}]
  %s5 = inlined_call_operand.vmem [shape: f32[1,128,128], index: 5, kind: input, shape index: {}]
  %s6 = inlined_call_operand.vmem [shape: f32[1,8,128], index: 6, kind: output, shape index: {}]
  %s7 = sld [smem:[#allocation0]]
  $region34: #{eiie_recurrent_forward.1} parent=0
    _
  %s9 = ssub.s32 1, %s7
  %s10 = scalar_select 0, %s9, %s7
  // Predicated region
  $region2: #{eiie_recurrent_forward.1} parent=0 // pred_check
    _
  $region3: #{eiie_recurrent_forward.1} parent=0 // pred_check_branch
    %12 = sbr.rel (0) target = $region5
  $region4: #{eiie_recurrent_forward.1} parent=0 // pred_region
    _
  $region5: #{eiie_recurrent_forward.1} parent=0 // pred_fallthru
    _
  // Predicated region
  $region6: #{eiie_recurrent_forward.1} parent=0 // pred_check
    _
  $region7: #{eiie_recurrent_forward.1} parent=0 // pred_check_branch
    %14 = sbr.rel (0) target = $region9
  $region8: #{eiie_recurrent_forward.1} parent=0 // pred_region
    _
  $region9: #{eiie_recurrent_forward.1} parent=0 // pred_fallthru
    _
  // Predicated region
  $region10: #{eiie_recurrent_forward.1} parent=0 // pred_check
    _
  $region11: #{eiie_recurrent_forward.1} parent=0 // pred_check_branch
    %16 = sbr.rel (0) target = $region13
  $region12: #{eiie_recurrent_forward.1} parent=0 // pred_region
    _
  $region13: #{eiie_recurrent_forward.1} parent=0 // pred_fallthru
    _
  // Predicated region
  $region14: #{eiie_recurrent_forward.1} parent=0 // pred_check
    _
  $region15: #{eiie_recurrent_forward.1} parent=0 // pred_check_branch
    %18 = sbr.rel (0) target = $region17
  $region16: #{eiie_recurrent_forward.1} parent=0 // pred_region
    _
  $region17: #{eiie_recurrent_forward.1} parent=0 // pred_fallthru
    _
  // Predicated region
  $region18: #{eiie_recurrent_forward.1} parent=0 // pred_check
    _
  $region19: #{eiie_recurrent_forward.1} parent=0 // pred_check_branch
    %20 = sbr.rel (0) target = $region21
  $region20: #{eiie_recurrent_forward.1} parent=0 // pred_region
    _
  $region21: #{eiie_recurrent_forward.1} parent=0 // pred_fallthru
    _
  // Predicated region
  $region22: #{eiie_recurrent_forward.1} parent=0 // pred_check
    _
  $region23: #{eiie_recurrent_forward.1} parent=0 // pred_check_branch
    %22 = sbr.rel (0) target = $region25
  $region24: #{eiie_recurrent_forward.1} parent=0 // pred_region
    _
  $region25: #{eiie_recurrent_forward.1} parent=0 // pred_fallthru
    _
  %v23 = vld [vmem:[%s0] sm:$0xff]
  %v24 = vld [vmem:[%s0 + $0x8] sm:$0xff]
  %v25 = vld [vmem:[%s0 + $0x10] sm:$0xff]
  %v26 = vld [vmem:[%s0 + $0x18] sm:$0xff]
  %v27 = vld [vmem:[%s0 + $0x20] sm:$0xff]
  %v28 = vld [vmem:[%s0 + $0x28] sm:$0xff]
  %v29 = vld [vmem:[%s0 + $0x30] sm:$0xff]
  %v30 = vld [vmem:[%s0 + $0x38] sm:$0xff]
  %v31 = vld [vmem:[%s1] sm:$0xff]
  %v32 = vld [vmem:[%s1 + $0x8] sm:$0xf]
  %v33 = vld [vmem:[%s4] sm:$0x1]
  %v35 = vlaneseq
  %v36 = vshrl.u32 %v35, 7
  %v37 = vsub.s32 0, %v36
  %v38 = vrot.slane %v33, %v37
  %vm40 = vcmask 97280
  %v42 = vsel %vm40, %v23, 0
  %v45 = vsel %vm40, %v24, 0
  %v48 = vsel %vm40, %v25, 0
  %v51 = vsel %vm40, %v26, 0
  %v54 = vsel %vm40, %v27, 0
  %v57 = vsel %vm40, %v28, 0
  %v60 = vsel %vm40, %v29, 0
  %v63 = vsel %vm40, %v30, 0
  %vm65 = vcmask 1043456
  %v67 = vsel %vm65, %v32, 0
  %69 = vmatprep.subr.mxu0 0.0
  %70 = vmatpush1.msra.mxu0 0.0
  %71 = vmatprep.subr.mxu0 0.0
  %72 = vmatpush1.msra.mxu0 0.0
  %73 = vmatprep.subr.mxu0 0.0
  %74 = vmatpush1.msra.mxu0 0.0
  %75 = vmatprep.subr.mxu0 0.0
  %76 = vmatpush1.msra.mxu0 0.0
  %77 = vmatprep.subr.mxu0 0.0
  %78 = vmatpush1.msra.mxu0 0.0
  %79 = vmatprep.subr.mxu0 0.0
  %80 = vmatpush1.msra.mxu0 0.0
  %81 = vmatprep.subr.mxu0 0.0
  %82 = vmatpush1.msra.mxu0 0.0
  %83 = vmatprep.subr.mxu0 0.0
  %84 = vmatpush1.msra.mxu0 0.0
  %85 = vmatprep.subr.mxu0 0.0
  %86 = vmatpush1.msra.mxu0 0.0
  %87 = vmatprep.subr.mxu0 0.0
  %88 = vmatpush1.msra.mxu0 0.0
  %89 = vmatprep.subr.mxu0 0.0
  %90 = vmatpush1.msra.mxu0 0.0
  %91 = vmatprep.subr.mxu0 0.0
  %92 = vmatpush1.msra.mxu0 0.0
  %93 = vmatprep.subr.mxu0 0.0
  %94 = vmatpush1.msra.mxu0 0.0
  %95 = vmatprep.subr.mxu0 0.0
  %96 = vmatpush1.msra.mxu0 0.0
  %97 = vmatprep.subr.mxu0 0.0
  %98 = vmatpush1.msra.mxu0 %v67
  %99 = vmatprep.subr.mxu0 0.0
  %100 = vmatpush1.msra.mxu0 %v31
  %101 = vmatprep.subr.mxu0 0.0
  %102 = vmatpush2.msra.mxu0 0.0
  %103 = vmatprep.subr.mxu0 0.0
  %104 = vmatpush2.msra.mxu0 0.0
  %105 = vmatprep.subr.mxu0 0.0
  %106 = vmatpush2.msra.mxu0 0.0
  %107 = vmatprep.subr.mxu0 0.0
  %108 = vmatpush2.msra.mxu0 0.0
  %109 = vmatprep.subr.mxu0 0.0
  %110 = vmatpush2.msra.mxu0 0.0
  %111 = vmatprep.subr.mxu0 0.0
  %112 = vmatpush2.msra.mxu0 0.0
  %113 = vmatprep.subr.mxu0 0.0
  %114 = vmatpush2.msra.mxu0 0.0
  %115 = vmatprep.subr.mxu0 0.0
  %116 = vmatpush2.msra.mxu0 0.0
  %117 = vmatprep.subr.mxu0 0.0
  %118 = vmatpush2.msra.mxu0 0.0
  %119 = vmatprep.subr.mxu0 0.0
  %120 = vmatpush2.msra.mxu0 0.0
  %121 = vmatprep.subr.mxu0 0.0
  %122 = vmatpush2.msra.mxu0 0.0
  %123 = vmatprep.subr.mxu0 0.0
  %124 = vmatpush2.msra.mxu0 0.0
  %125 = vmatprep.subr.mxu0 0.0
  %126 = vmatpush2.msra.mxu0 0.0
  %127 = vmatprep.subr.mxu0 0.0
  %128 = vmatpush2.msra.mxu0 0.0
  %129 = vmatprep.subr.mxu0 0.0
  %130 = vmatpush2.msra.mxu0 0.0
  %131 = vmatprep.subr.mxu0 0.0
  %132 = vmatpush2.msra.mxu0 0.0
  %133 = vmatprep.mubr.f32.mxu0 0.0
  %134 = vmatmul.mubr.f32.gmra.mxu0 %v42
  %v135 = vpop.f32.mrf.mxu0
  %v136 = vadd.f32 %v38, %v135
  %v137 = vpop.f32.mrf.mxu0
  %138 = vmatprep.mubr.f32.mxu0 0.0
  %139 = vmatmul.mubr.f32.gmra.mxu0 %v45
  %v140 = vpop.f32.mrf.mxu0
  %v141 = vadd.f32 %v38, %v140
  %v142 = vpop.f32.mrf.mxu0
  %143 = vmatprep.mubr.f32.mxu0 0.0
  %144 = vmatmul.mubr.f32.gmra.mxu0 %v48
  %v145 = vpop.f32.mrf.mxu0
  %v146 = vadd.f32 %v38, %v145
  %v147 = vpop.f32.mrf.mxu0
  %148 = vmatprep.mubr.f32.mxu0 0.0
  %149 = vmatmul.mubr.f32.gmra.mxu0 %v51
  %v150 = vpop.f32.mrf.mxu0
  %v151 = vadd.f32 %v38, %v150
  %v152 = vpop.f32.mrf.mxu0
  %153 = vmatprep.mubr.f32.mxu0 0.0
  %154 = vmatmul.mubr.f32.gmra.mxu0 %v54
  %v155 = vpop.f32.mrf.mxu0
  %v156 = vadd.f32 %v38, %v155
  %v157 = vpop.f32.mrf.mxu0
  %158 = vmatprep.mubr.f32.mxu0 0.0
  %159 = vmatmul.mubr.f32.gmra.mxu0 %v57
  %v160 = vpop.f32.mrf.mxu0
  %v161 = vadd.f32 %v38, %v160
  %v162 = vpop.f32.mrf.mxu0
  %163 = vmatprep.mubr.f32.mxu0 0.0
  %164 = vmatmul.mubr.f32.gmra.mxu0 %v60
  %v165 = vpop.f32.mrf.mxu0
  %v166 = vadd.f32 %v38, %v165
  %v167 = vpop.f32.mrf.mxu0
  %168 = vmatprep.mubr.f32.mxu0 0.0
  %169 = vmatmul.mubr.f32.gmra.mxu0 %v63
  %v170 = vpop.f32.mrf.mxu0
  %v171 = vadd.f32 %v38, %v170
  %v172 = vpop.f32.mrf.mxu0
  %173 = vdwg.mxu0
  %174 = vst [vmem:[#allocation2] sm:$0xff] %v136
  %175 = vst [vmem:[#allocation2 + $0x8] sm:$0xff] %v141
  %176 = vst [vmem:[#allocation2 + $0x10] sm:$0xff] %v146
  %177 = vst [vmem:[#allocation2 + $0x18] sm:$0xff] %v151
  %178 = vst [vmem:[#allocation2 + $0x20] sm:$0xff] %v156
  %179 = vst [vmem:[#allocation2 + $0x28] sm:$0xff] %v161
  %180 = vst [vmem:[#allocation2 + $0x30] sm:$0xff] %v166
  %181 = vst [vmem:[#allocation2 + $0x38] sm:$0xff] %v171
  %v182 = vld [vmem:[#allocation2] sm:$0xff]
  %v183 = vld [vmem:[%s3] sm:$0xff]
  %v184 = vld [vmem:[%s3 + $0x8] sm:$0xff]
  %v185 = vld [vmem:[%s3 + $0x10] sm:$0xff]
  %v186 = vld [vmem:[%s3 + $0x18] sm:$0xff]
  %v187 = vld [vmem:[%s3 + $0x20] sm:$0xff]
  %v188 = vld [vmem:[%s3 + $0x28] sm:$0xff]
  %v189 = vld [vmem:[%s3 + $0x30] sm:$0xff]
  %v190 = vld [vmem:[%s3 + $0x38] sm:$0xff]
  %v191 = vld [vmem:[%s3 + $0x40] sm:$0xff]
  %v192 = vld [vmem:[%s3 + $0x48] sm:$0xff]
  %v193 = vld [vmem:[%s3 + $0x50] sm:$0xff]
  %v194 = vld [vmem:[%s3 + $0x58] sm:$0xff]
  %v195 = vld [vmem:[%s3 + $0x60] sm:$0xff]
  %v196 = vld [vmem:[%s3 + $0x68] sm:$0xff]
  %v197 = vld [vmem:[%s3 + $0x70] sm:$0xff]
  %v198 = vld [vmem:[%s3 + $0x78] sm:$0xff]
  %199 = vmatprep.subr.mxu0 0.0
  %200 = vmatpush1.msra.mxu0 %v198
  %201 = vmatprep.subr.mxu0 0.0
  %202 = vmatpush1.msra.mxu0 %v197
  %203 = vmatprep.subr.mxu0 0.0
  %204 = vmatpush1.msra.mxu0 %v196
  %205 = vmatprep.subr.mxu0 0.0
  %206 = vmatpush1.msra.mxu0 %v195
  %207 = vmatprep.subr.mxu0 0.0
  %208 = vmatpush1.msra.mxu0 %v194
  %209 = vmatprep.subr.mxu0 0.0
  %210 = vmatpush1.msra.mxu0 %v193
  %211 = vmatprep.subr.mxu0 0.0
  %212 = vmatpush1.msra.mxu0 %v192
  %213 = vmatprep.subr.mxu0 0.0
  %214 = vmatpush1.msra.mxu0 %v191
  %215 = vmatprep.subr.mxu0 0.0
  %216 = vmatpush1.msra.mxu0 %v190
  %217 = vmatprep.subr.mxu0 0.0
  %218 = vmatpush1.msra.mxu0 %v189
  %219 = vmatprep.subr.mxu0 0.0
  %220 = vmatpush1.msra.mxu0 %v188
  %221 = vmatprep.subr.mxu0 0.0
  %222 = vmatpush1.msra.mxu0 %v187
  %223 = vmatprep.subr.mxu0 0.0
  %224 = vmatpush1.msra.mxu0 %v186
  %225 = vmatprep.subr.mxu0 0.0
  %226 = vmatpush1.msra.mxu0 %v185
  %227 = vmatprep.subr.mxu0 0.0
  %228 = vmatpush1.msra.mxu0 %v184
  %229 = vmatprep.subr.mxu0 0.0
  %230 = vmatpush1.msra.mxu0 %v183
  %231 = vmatprep.subr.mxu0 0.0
  %232 = vmatpush2.msra.mxu0 0.0
  %233 = vmatprep.subr.mxu0 0.0
  %234 = vmatpush2.msra.mxu0 0.0
  %235 = vmatprep.subr.mxu0 0.0
  %236 = vmatpush2.msra.mxu0 0.0
  %237 = vmatprep.subr.mxu0 0.0
  %238 = vmatpush2.msra.mxu0 0.0
  %239 = vmatprep.subr.mxu0 0.0
  %240 = vmatpush2.msra.mxu0 0.0
  %241 = vmatprep.subr.mxu0 0.0
  %242 = vmatpush2.msra.mxu0 0.0
  %243 = vmatprep.subr.mxu0 0.0
  %244 = vmatpush2.msra.mxu0 0.0
  %245 = vmatprep.subr.mxu0 0.0
  %246 = vmatpush2.msra.mxu0 0.0
  %247 = vmatprep.subr.mxu0 0.0
  %248 = vmatpush2.msra.mxu0 0.0
  %249 = vmatprep.subr.mxu0 0.0
  %250 = vmatpush2.msra.mxu0 0.0
  %251 = vmatprep.subr.mxu0 0.0
  %252 = vmatpush2.msra.mxu0 0.0
  %253 = vmatprep.subr.mxu0 0.0
  %254 = vmatpush2.msra.mxu0 0.0
  %255 = vmatprep.subr.mxu0 0.0
  %256 = vmatpush2.msra.mxu0 0.0
  %257 = vmatprep.subr.mxu0 0.0
  %258 = vmatpush2.msra.mxu0 0.0
  %259 = vmatprep.subr.mxu0 0.0
  %260 = vmatpush2.msra.mxu0 0.0
  %261 = vmatprep.subr.mxu0 0.0
  %262 = vmatpush2.msra.mxu0 0.0
  %263 = vmatprep.mubr.f32.mxu0 0.0
  %264 = vmatmul.mubr.f32.gmra.mxu0 0.0
  %v265 = vpop.f32.mrf.mxu0
  %v266 = vadd.f32 0.0, %v265
  %v267 = vpop.f32.mrf.mxu0
  %268 = vdwg.mxu0
  %v269 = vadd.f32 %v182, %v266
  %v270 = vtanh.pop %v269
  %271 = vst [vmem:[#allocation3] sm:$0xff] %v270
  %s272 = scalar_lea.vmem [#allocation2], 8
  %v273 = vld [vmem:[%s272] sm:$0xff]
  %v274 = vld [vmem:[%s3] sm:$0xff]
  %v275 = vld [vmem:[%s3 + $0x8] sm:$0xff]
  %v276 = vld [vmem:[%s3 + $0x10] sm:$0xff]
  %v277 = vld [vmem:[%s3 + $0x18] sm:$0xff]
  %v278 = vld [vmem:[%s3 + $0x20] sm:$0xff]
  %v279 = vld [vmem:[%s3 + $0x28] sm:$0xff]
  %v280 = vld [vmem:[%s3 + $0x30] sm:$0xff]
  %v281 = vld [vmem:[%s3 + $0x38] sm:$0xff]
  %v282 = vld [vmem:[%s3 + $0x40] sm:$0xff]
  %v283 = vld [vmem:[%s3 + $0x48] sm:$0xff]
  %v284 = vld [vmem:[%s3 + $0x50] sm:$0xff]
  %v285 = vld [vmem:[%s3 + $0x58] sm:$0xff]
  %v286 = vld [vmem:[%s3 + $0x60] sm:$0xff]
  %v287 = vld [vmem:[%s3 + $0x68] sm:$0xff]
  %v288 = vld [vmem:[%s3 + $0x70] sm:$0xff]
  %v289 = vld [vmem:[%s3 + $0x78] sm:$0xff]
  %290 = vmatprep.subr.mxu0 0.0
  %291 = vmatpush1.msra.mxu0 %v289
  %292 = vmatprep.subr.mxu0 0.0
  %293 = vmatpush1.msra.mxu0 %v288
  %294 = vmatprep.subr.mxu0 0.0
  %295 = vmatpush1.msra.mxu0 %v287
  %296 = vmatprep.subr.mxu0 0.0
  %297 = vmatpush1.msra.mxu0 %v286
  %298 = vmatprep.subr.mxu0 0.0
  %299 = vmatpush1.msra.mxu0 %v285
  %300 = vmatprep.subr.mxu0 0.0
  %301 = vmatpush1.msra.mxu0 %v284
  %302 = vmatprep.subr.mxu0 0.0
  %303 = vmatpush1.msra.mxu0 %v283
  %304 = vmatprep.subr.mxu0 0.0
  %305 = vmatpush1.msra.mxu0 %v282
  %306 = vmatprep.subr.mxu0 0.0
  %307 = vmatpush1.msra.mxu0 %v281
  %308 = vmatprep.subr.mxu0 0.0
  %309 = vmatpush1.msra.mxu0 %v280
  %310 = vmatprep.subr.mxu0 0.0
  %311 = vmatpush1.msra.mxu0 %v279
  %312 = vmatprep.subr.mxu0 0.0
  %313 = vmatpush1.msra.mxu0 %v278
  %314 = vmatprep.subr.mxu0 0.0
  %315 = vmatpush1.msra.mxu0 %v277
  %316 = vmatprep.subr.mxu0 0.0
  %317 = vmatpush1.msra.mxu0 %v276
  %318 = vmatprep.subr.mxu0 0.0
  %319 = vmatpush1.msra.mxu0 %v275
  %320 = vmatprep.subr.mxu0 0.0
  %321 = vmatpush1.msra.mxu0 %v274
  %322 = vmatprep.subr.mxu0 0.0
  %323 = vmatpush2.msra.mxu0 0.0
  %324 = vmatprep.subr.mxu0 0.0
  %325 = vmatpush2.msra.mxu0 0.0
  %326 = vmatprep.subr.mxu0 0.0
  %327 = vmatpush2.msra.mxu0 0.0
  %328 = vmatprep.subr.mxu0 0.0
  %329 = vmatpush2.msra.mxu0 0.0
  %330 = vmatprep.subr.mxu0 0.0
  %331 = vmatpush2.msra.mxu0 0.0
  %332 = vmatprep.subr.mxu0 0.0
  %333 = vmatpush2.msra.mxu0 0.0
  %334 = vmatprep.subr.mxu0 0.0
  %335 = vmatpush2.msra.mxu0 0.0
  %336 = vmatprep.subr.mxu0 0.0
  %337 = vmatpush2.msra.mxu0 0.0
  %338 = vmatprep.subr.mxu0 0.0
  %339 = vmatpush2.msra.mxu0 0.0
  %340 = vmatprep.subr.mxu0 0.0
  %341 = vmatpush2.msra.mxu0 0.0
  %342 = vmatprep.subr.mxu0 0.0
  %343 = vmatpush2.msra.mxu0 0.0
  %344 = vmatprep.subr.mxu0 0.0
  %345 = vmatpush2.msra.mxu0 0.0
  %346 = vmatprep.subr.mxu0 0.0
  %347 = vmatpush2.msra.mxu0 0.0
  %348 = vmatprep.subr.mxu0 0.0
  %349 = vmatpush2.msra.mxu0 0.0
  %350 = vmatprep.subr.mxu0 0.0
  %351 = vmatpush2.msra.mxu0 0.0
  %352 = vmatprep.subr.mxu0 0.0
  %353 = vmatpush2.msra.mxu0 0.0
  %354 = vmatprep.mubr.f32.mxu0 0.0
  %355 = vmatmul.mubr.f32.gmra.mxu0 %v270
  %v356 = vpop.f32.mrf.mxu0
  %v357 = vadd.f32 0.0, %v356
  %v358 = vpop.f32.mrf.mxu0
  %359 = vdwg.mxu0
  %v360 = vadd.f32 %v273, %v357
  %v361 = vtanh.pop %v360
  %s362 = scalar_lea.vmem [#allocation3], 8
  %363 = vst [vmem:[%s362] sm:$0xff] %v361
  %s364 = scalar_lea.vmem [#allocation2], 16
  %v365 = vld [vmem:[%s364] sm:$0xff]
  %v366 = vld [vmem:[%s3] sm:$0xff]
  %v367 = vld [vmem:[%s3 + $0x8] sm:$0xff]
  %v368 = vld [vmem:[%s3 + $0x10] sm:$0xff]
  %v369 = vld [vmem:[%s3 + $0x18] sm:$0xff]
  %v370 = vld [vmem:[%s3 + $0x20] sm:$0xff]
  %v371 = vld [vmem:[%s3 + $0x28] sm:$0xff]
  %v372 = vld [vmem:[%s3 + $0x30] sm:$0xff]
  %v373 = vld [vmem:[%s3 + $0x38] sm:$0xff]
  %v374 = vld [vmem:[%s3 + $0x40] sm:$0xff]
  %v375 = vld [vmem:[%s3 + $0x48] sm:$0xff]
  %v376 = vld [vmem:[%s3 + $0x50] sm:$0xff]
  %v377 = vld [vmem:[%s3 + $0x58] sm:$0xff]
  %v378 = vld [vmem:[%s3 + $0x60] sm:$0xff]
  %v379 = vld [vmem:[%s3 + $0x68] sm:$0xff]
  %v380 = vld [vmem:[%s3 + $0x70] sm:$0xff]
  %v381 = vld [vmem:[%s3 + $0x78] sm:$0xff]
  %382 = vmatprep.subr.mxu0 0.0
  %383 = vmatpush1.msra.mxu0 %v381
  %384 = vmatprep.subr.mxu0 0.0
  %385 = vmatpush1.msra.mxu0 %v380
  %386 = vmatprep.subr.mxu0 0.0
  %387 = vmatpush1.msra.mxu0 %v379
  %388 = vmatprep.subr.mxu0 0.0
  %389 = vmatpush1.msra.mxu0 %v378
  %390 = vmatprep.subr.mxu0 0.0
  %391 = vmatpush1.msra.mxu0 %v377
  %392 = vmatprep.subr.mxu0 0.0
  %393 = vmatpush1.msra.mxu0 %v376
  %394 = vmatprep.subr.mxu0 0.0
  %395 = vmatpush1.msra.mxu0 %v375
  %396 = vmatprep.subr.mxu0 0.0
  %397 = vmatpush1.msra.mxu0 %v374
  %398 = vmatprep.subr.mxu0 0.0
  %399 = vmatpush1.msra.mxu0 %v373
  %400 = vmatprep.subr.mxu0 0.0
  %401 = vmatpush1.msra.mxu0 %v372
  %402 = vmatprep.subr.mxu0 0.0
  %403 = vmatpush1.msra.mxu0 %v371
  %404 = vmatprep.subr.mxu0 0.0
  %405 = vmatpush1.msra.mxu0 %v370
  %406 = vmatprep.subr.mxu0 0.0
  %407 = vmatpush1.msra.mxu0 %v369
  %408 = vmatprep.subr.mxu0 0.0
  %409 = vmatpush1.msra.mxu0 %v368
  %410 = vmatprep.subr.mxu0 0.0
  %411 = vmatpush1.msra.mxu0 %v367
  %412 = vmatprep.subr.mxu0 0.0
  %413 = vmatpush1.msra.mxu0 %v366
  %414 = vmatprep.subr.mxu0 0.0
  %415 = vmatpush2.msra.mxu0 0.0
  %416 = vmatprep.subr.mxu0 0.0
  %417 = vmatpush2.msra.mxu0 0.0
  %418 = vmatprep.subr.mxu0 0.0
  %419 = vmatpush2.msra.mxu0 0.0
  %420 = vmatprep.subr.mxu0 0.0
  %421 = vmatpush2.msra.mxu0 0.0
  %422 = vmatprep.subr.mxu0 0.0
  %423 = vmatpush2.msra.mxu0 0.0
  %424 = vmatprep.subr.mxu0 0.0
  %425 = vmatpush2.msra.mxu0 0.0
  %426 = vmatprep.subr.mxu0 0.0
  %427 = vmatpush2.msra.mxu0 0.0
  %428 = vmatprep.subr.mxu0 0.0
  %429 = vmatpush2.msra.mxu0 0.0
  %430 = vmatprep.subr.mxu0 0.0
  %431 = vmatpush2.msra.mxu0 0.0
  %432 = vmatprep.subr.mxu0 0.0
  %433 = vmatpush2.msra.mxu0 0.0
  %434 = vmatprep.subr.mxu0 0.0
  %435 = vmatpush2.msra.mxu0 0.0
  %436 = vmatprep.subr.mxu0 0.0
  %437 = vmatpush2.msra.mxu0 0.0
  %438 = vmatprep.subr.mxu0 0.0
  %439 = vmatpush2.msra.mxu0 0.0
  %440 = vmatprep.subr.mxu0 0.0
  %441 = vmatpush2.msra.mxu0 0.0
  %442 = vmatprep.subr.mxu0 0.0
  %443 = vmatpush2.msra.mxu0 0.0
  %444 = vmatprep.subr.mxu0 0.0
  %445 = vmatpush2.msra.mxu0 0.0
  %446 = vmatprep.mubr.f32.mxu0 0.0
  %447 = vmatmul.mubr.f32.gmra.mxu0 %v361
  %v448 = vpop.f32.mrf.mxu0
  %v449 = vadd.f32 0.0, %v448
  %v450 = vpop.f32.mrf.mxu0
  %451 = vdwg.mxu0
  %v452 = vadd.f32 %v365, %v449
  %v453 = vtanh.pop %v452
  %s454 = scalar_lea.vmem [#allocation3], 16
  %455 = vst [vmem:[%s454] sm:$0xff] %v453
  %s456 = scalar_lea.vmem [#allocation2], 24
  %v457 = vld [vmem:[%s456] sm:$0xff]
  %v458 = vld [vmem:[%s3] sm:$0xff]
  %v459 = vld [vmem:[%s3 + $0x8] sm:$0xff]
  %v460 = vld [vmem:[%s3 + $0x10] sm:$0xff]
  %v461 = vld [vmem:[%s3 + $0x18] sm:$0xff]
  %v462 = vld [vmem:[%s3 + $0x20] sm:$0xff]
  %v463 = vld [vmem:[%s3 + $0x28] sm:$0xff]
  %v464 = vld [vmem:[%s3 + $0x30] sm:$0xff]
  %v465 = vld [vmem:[%s3 + $0x38] sm:$0xff]
  %v466 = vld [vmem:[%s3 + $0x40] sm:$0xff]
  %v467 = vld [vmem:[%s3 + $0x48] sm:$0xff]
  %v468 = vld [vmem:[%s3 + $0x50] sm:$0xff]
  %v469 = vld [vmem:[%s3 + $0x58] sm:$0xff]
  %v470 = vld [vmem:[%s3 + $0x60] sm:$0xff]
  %v471 = vld [vmem:[%s3 + $0x68] sm:$0xff]
  %v472 = vld [vmem:[%s3 + $0x70] sm:$0xff]
  %v473 = vld [vmem:[%s3 + $0x78] sm:$0xff]
  %474 = vmatprep.subr.mxu0 0.0
  %475 = vmatpush1.msra.mxu0 %v473
  %476 = vmatprep.subr.mxu0 0.0
  %477 = vmatpush1.msra.mxu0 %v472
  %478 = vmatprep.subr.mxu0 0.0
  %479 = vmatpush1.msra.mxu0 %v471
  %480 = vmatprep.subr.mxu0 0.0
  %481 = vmatpush1.msra.mxu0 %v470
  %482 = vmatprep.subr.mxu0 0.0
  %483 = vmatpush1.msra.mxu0 %v469
  %484 = vmatprep.subr.mxu0 0.0
  %485 = vmatpush1.msra.mxu0 %v468
  %486 = vmatprep.subr.mxu0 0.0
  %487 = vmatpush1.msra.mxu0 %v467
  %488 = vmatprep.subr.mxu0 0.0
  %489 = vmatpush1.msra.mxu0 %v466
  %490 = vmatprep.subr.mxu0 0.0
  %491 = vmatpush1.msra.mxu0 %v465
  %492 = vmatprep.subr.mxu0 0.0
  %493 = vmatpush1.msra.mxu0 %v464
  %494 = vmatprep.subr.mxu0 0.0
  %495 = vmatpush1.msra.mxu0 %v463
  %496 = vmatprep.subr.mxu0 0.0
  %497 = vmatpush1.msra.mxu0 %v462
  %498 = vmatprep.subr.mxu0 0.0
  %499 = vmatpush1.msra.mxu0 %v461
  %500 = vmatprep.subr.mxu0 0.0
  %501 = vmatpush1.msra.mxu0 %v460
  %502 = vmatprep.subr.mxu0 0.0
  %503 = vmatpush1.msra.mxu0 %v459
  %504 = vmatprep.subr.mxu0 0.0
  %505 = vmatpush1.msra.mxu0 %v458
  %506 = vmatprep.subr.mxu0 0.0
  %507 = vmatpush2.msra.mxu0 0.0
  %508 = vmatprep.subr.mxu0 0.0
  %509 = vmatpush2.msra.mxu0 0.0
  %510 = vmatprep.subr.mxu0 0.0
  %511 = vmatpush2.msra.mxu0 0.0
  %512 = vmatprep.subr.mxu0 0.0
  %513 = vmatpush2.msra.mxu0 0.0
  %514 = vmatprep.subr.mxu0 0.0
  %515 = vmatpush2.msra.mxu0 0.0
  %516 = vmatprep.subr.mxu0 0.0
  %517 = vmatpush2.msra.mxu0 0.0
  %518 = vmatprep.subr.mxu0 0.0
  %519 = vmatpush2.msra.mxu0 0.0
  %520 = vmatprep.subr.mxu0 0.0
  %521 = vmatpush2.msra.mxu0 0.0
  %522 = vmatprep.subr.mxu0 0.0
  %523 = vmatpush2.msra.mxu0 0.0
  %524 = vmatprep.subr.mxu0 0.0
  %525 = vmatpush2.msra.mxu0 0.0
  %526 = vmatprep.subr.mxu0 0.0
  %527 = vmatpush2.msra.mxu0 0.0
  %528 = vmatprep.subr.mxu0 0.0
  %529 = vmatpush2.msra.mxu0 0.0
  %530 = vmatprep.subr.mxu0 0.0
  %531 = vmatpush2.msra.mxu0 0.0
  %532 = vmatprep.subr.mxu0 0.0
  %533 = vmatpush2.msra.mxu0 0.0
  %534 = vmatprep.subr.mxu0 0.0
  %535 = vmatpush2.msra.mxu0 0.0
  %536 = vmatprep.subr.mxu0 0.0
  %537 = vmatpush2.msra.mxu0 0.0
  %538 = vmatprep.mubr.f32.mxu0 0.0
  %539 = vmatmul.mubr.f32.gmra.mxu0 %v453
  %v540 = vpop.f32.mrf.mxu0
  %v541 = vadd.f32 0.0, %v540
  %v542 = vpop.f32.mrf.mxu0
  %543 = vdwg.mxu0
  %v544 = vadd.f32 %v457, %v541
  %v545 = vtanh.pop %v544
  %s546 = scalar_lea.vmem [#allocation3], 24
  %547 = vst [vmem:[%s546] sm:$0xff] %v545
  %s548 = scalar_lea.vmem [#allocation2], 32
  %v549 = vld [vmem:[%s548] sm:$0xff]
  %v550 = vld [vmem:[%s3] sm:$0xff]
  %v551 = vld [vmem:[%s3 + $0x8] sm:$0xff]
  %v552 = vld [vmem:[%s3 + $0x10] sm:$0xff]
  %v553 = vld [vmem:[%s3 + $0x18] sm:$0xff]
  %v554 = vld [vmem:[%s3 + $0x20] sm:$0xff]
  %v555 = vld [vmem:[%s3 + $0x28] sm:$0xff]
  %v556 = vld [vmem:[%s3 + $0x30] sm:$0xff]
  %v557 = vld [vmem:[%s3 + $0x38] sm:$0xff]
  %v558 = vld [vmem:[%s3 + $0x40] sm:$0xff]
  %v559 = vld [vmem:[%s3 + $0x48] sm:$0xff]
  %v560 = vld [vmem:[%s3 + $0x50] sm:$0xff]
  %v561 = vld [vmem:[%s3 + $0x58] sm:$0xff]
  %v562 = vld [vmem:[%s3 + $0x60] sm:$0xff]
  %v563 = vld [vmem:[%s3 + $0x68] sm:$0xff]
  %v564 = vld [vmem:[%s3 + $0x70] sm:$0xff]
  %v565 = vld [vmem:[%s3 + $0x78] sm:$0xff]
  %566 = vmatprep.subr.mxu0 0.0
  %567 = vmatpush1.msra.mxu0 %v565
  %568 = vmatprep.subr.mxu0 0.0
  %569 = vmatpush1.msra.mxu0 %v564
  %570 = vmatprep.subr.mxu0 0.0
  %571 = vmatpush1.msra.mxu0 %v563
  %572 = vmatprep.subr.mxu0 0.0
  %573 = vmatpush1.msra.mxu0 %v562
  %574 = vmatprep.subr.mxu0 0.0
  %575 = vmatpush1.msra.mxu0 %v561
  %576 = vmatprep.subr.mxu0 0.0
  %577 = vmatpush1.msra.mxu0 %v560
  %578 = vmatprep.subr.mxu0 0.0
  %579 = vmatpush1.msra.mxu0 %v559
  %580 = vmatprep.subr.mxu0 0.0
  %581 = vmatpush1.msra.mxu0 %v558
  %582 = vmatprep.subr.mxu0 0.0
  %583 = vmatpush1.msra.mxu0 %v557
  %584 = vmatprep.subr.mxu0 0.0
  %585 = vmatpush1.msra.mxu0 %v556
  %586 = vmatprep.subr.mxu0 0.0
  %587 = vmatpush1.msra.mxu0 %v555
  %588 = vmatprep.subr.mxu0 0.0
  %589 = vmatpush1.msra.mxu0 %v554
  %590 = vmatprep.subr.mxu0 0.0
  %591 = vmatpush1.msra.mxu0 %v553
  %592 = vmatprep.subr.mxu0 0.0
  %593 = vmatpush1.msra.mxu0 %v552
  %594 = vmatprep.subr.mxu0 0.0
  %595 = vmatpush1.msra.mxu0 %v551
  %596 = vmatprep.subr.mxu0 0.0
  %597 = vmatpush1.msra.mxu0 %v550
  %598 = vmatprep.subr.mxu0 0.0
  %599 = vmatpush2.msra.mxu0 0.0
  %600 = vmatprep.subr.mxu0 0.0
  %601 = vmatpush2.msra.mxu0 0.0
  %602 = vmatprep.subr.mxu0 0.0
  %603 = vmatpush2.msra.mxu0 0.0
  %604 = vmatprep.subr.mxu0 0.0
  %605 = vmatpush2.msra.mxu0 0.0
  %606 = vmatprep.subr.mxu0 0.0
  %607 = vmatpush2.msra.mxu0 0.0
  %608 = vmatprep.subr.mxu0 0.0
  %609 = vmatpush2.msra.mxu0 0.0
  %610 = vmatprep.subr.mxu0 0.0
  %611 = vmatpush2.msra.mxu0 0.0
  %612 = vmatprep.subr.mxu0 0.0
  %613 = vmatpush2.msra.mxu0 0.0
  %614 = vmatprep.subr.mxu0 0.0
  %615 = vmatpush2.msra.mxu0 0.0
  %616 = vmatprep.subr.mxu0 0.0
  %617 = vmatpush2.msra.mxu0 0.0
  %618 = vmatprep.subr.mxu0 0.0
  %619 = vmatpush2.msra.mxu0 0.0
  %620 = vmatprep.subr.mxu0 0.0
  %621 = vmatpush2.msra.mxu0 0.0
  %622 = vmatprep.subr.mxu0 0.0
  %623 = vmatpush2.msra.mxu0 0.0
  %624 = vmatprep.subr.mxu0 0.0
  %625 = vmatpush2.msra.mxu0 0.0
  %626 = vmatprep.subr.mxu0 0.0
  %627 = vmatpush2.msra.mxu0 0.0
  %628 = vmatprep.subr.mxu0 0.0
  %629 = vmatpush2.msra.mxu0 0.0
  %630 = vmatprep.mubr.f32.mxu0 0.0
  %631 = vmatmul.mubr.f32.gmra.mxu0 %v545
  %v632 = vpop.f32.mrf.mxu0
  %v633 = vadd.f32 0.0, %v632
  %v634 = vpop.f32.mrf.mxu0
  %635 = vdwg.mxu0
  %v636 = vadd.f32 %v549, %v633
  %v637 = vtanh.pop %v636
  %s638 = scalar_lea.vmem [#allocation3], 32
  %639 = vst [vmem:[%s638] sm:$0xff] %v637
  %s640 = scalar_lea.vmem [#allocation2], 40
  %v641 = vld [vmem:[%s640] sm:$0xff]
  %v642 = vld [vmem:[%s3] sm:$0xff]
  %v643 = vld [vmem:[%s3 + $0x8] sm:$0xff]
  %v644 = vld [vmem:[%s3 + $0x10] sm:$0xff]
  %v645 = vld [vmem:[%s3 + $0x18] sm:$0xff]
  %v646 = vld [vmem:[%s3 + $0x20] sm:$0xff]
  %v647 = vld [vmem:[%s3 + $0x28] sm:$0xff]
  %v648 = vld [vmem:[%s3 + $0x30] sm:$0xff]
  %v649 = vld [vmem:[%s3 + $0x38] sm:$0xff]
  %v650 = vld [vmem:[%s3 + $0x40] sm:$0xff]
  %v651 = vld [vmem:[%s3 + $0x48] sm:$0xff]
  %v652 = vld [vmem:[%s3 + $0x50] sm:$0xff]
  %v653 = vld [vmem:[%s3 + $0x58] sm:$0xff]
  %v654 = vld [vmem:[%s3 + $0x60] sm:$0xff]
  %v655 = vld [vmem:[%s3 + $0x68] sm:$0xff]
  %v656 = vld [vmem:[%s3 + $0x70] sm:$0xff]
  %v657 = vld [vmem:[%s3 + $0x78] sm:$0xff]
  %658 = vmatprep.subr.mxu0 0.0
  %659 = vmatpush1.msra.mxu0 %v657
  %660 = vmatprep.subr.mxu0 0.0
  %661 = vmatpush1.msra.mxu0 %v656
  %662 = vmatprep.subr.mxu0 0.0
  %663 = vmatpush1.msra.mxu0 %v655
  %664 = vmatprep.subr.mxu0 0.0
  %665 = vmatpush1.msra.mxu0 %v654
  %666 = vmatprep.subr.mxu0 0.0
  %667 = vmatpush1.msra.mxu0 %v653
  %668 = vmatprep.subr.mxu0 0.0
  %669 = vmatpush1.msra.mxu0 %v652
  %670 = vmatprep.subr.mxu0 0.0
  %671 = vmatpush1.msra.mxu0 %v651
  %672 = vmatprep.subr.mxu0 0.0
  %673 = vmatpush1.msra.mxu0 %v650
  %674 = vmatprep.subr.mxu0 0.0
  %675 = vmatpush1.msra.mxu0 %v649
  %676 = vmatprep.subr.mxu0 0.0
  %677 = vmatpush1.msra.mxu0 %v648
  %678 = vmatprep.subr.mxu0 0.0
  %679 = vmatpush1.msra.mxu0 %v647
  %680 = vmatprep.subr.mxu0 0.0
  %681 = vmatpush1.msra.mxu0 %v646
  %682 = vmatprep.subr.mxu0 0.0
  %683 = vmatpush1.msra.mxu0 %v645
  %684 = vmatprep.subr.mxu0 0.0
  %685 = vmatpush1.msra.mxu0 %v644
  %686 = vmatprep.subr.mxu0 0.0
  %687 = vmatpush1.msra.mxu0 %v643
  %688 = vmatprep.subr.mxu0 0.0
  %689 = vmatpush1.msra.mxu0 %v642
  %690 = vmatprep.subr.mxu0 0.0
  %691 = vmatpush2.msra.mxu0 0.0
  %692 = vmatprep.subr.mxu0 0.0
  %693 = vmatpush2.msra.mxu0 0.0
  %694 = vmatprep.subr.mxu0 0.0
  %695 = vmatpush2.msra.mxu0 0.0
  %696 = vmatprep.subr.mxu0 0.0
  %697 = vmatpush2.msra.mxu0 0.0
  %698 = vmatprep.subr.mxu0 0.0
  %699 = vmatpush2.msra.mxu0 0.0
  %700 = vmatprep.subr.mxu0 0.0
  %701 = vmatpush2.msra.mxu0 0.0
  %702 = vmatprep.subr.mxu0 0.0
  %703 = vmatpush2.msra.mxu0 0.0
  %704 = vmatprep.subr.mxu0 0.0
  %705 = vmatpush2.msra.mxu0 0.0
  %706 = vmatprep.subr.mxu0 0.0
  %707 = vmatpush2.msra.mxu0 0.0
  %708 = vmatprep.subr.mxu0 0.0
  %709 = vmatpush2.msra.mxu0 0.0
  %710 = vmatprep.subr.mxu0 0.0
  %711 = vmatpush2.msra.mxu0 0.0
  %712 = vmatprep.subr.mxu0 0.0
  %713 = vmatpush2.msra.mxu0 0.0
  %714 = vmatprep.subr.mxu0 0.0
  %715 = vmatpush2.msra.mxu0 0.0
  %716 = vmatprep.subr.mxu0 0.0
  %717 = vmatpush2.msra.mxu0 0.0
  %718 = vmatprep.subr.mxu0 0.0
  %719 = vmatpush2.msra.mxu0 0.0
  %720 = vmatprep.subr.mxu0 0.0
  %721 = vmatpush2.msra.mxu0 0.0
  %722 = vmatprep.mubr.f32.mxu0 0.0
  %723 = vmatmul.mubr.f32.gmra.mxu0 %v637
  %v724 = vpop.f32.mrf.mxu0
  %v725 = vadd.f32 0.0, %v724
  %v726 = vpop.f32.mrf.mxu0
  %727 = vdwg.mxu0
  %v728 = vadd.f32 %v641, %v725
  %v729 = vtanh.pop %v728
  %s730 = scalar_lea.vmem [#allocation3], 40
  %731 = vst [vmem:[%s730] sm:$0xff] %v729
  %s732 = scalar_lea.vmem [#allocation2], 48
  %v733 = vld [vmem:[%s732] sm:$0xff]
  %v734 = vld [vmem:[%s3] sm:$0xff]
  %v735 = vld [vmem:[%s3 + $0x8] sm:$0xff]
  %v736 = vld [vmem:[%s3 + $0x10] sm:$0xff]
  %v737 = vld [vmem:[%s3 + $0x18] sm:$0xff]
  %v738 = vld [vmem:[%s3 + $0x20] sm:$0xff]
  %v739 = vld [vmem:[%s3 + $0x28] sm:$0xff]
  %v740 = vld [vmem:[%s3 + $0x30] sm:$0xff]
  %v741 = vld [vmem:[%s3 + $0x38] sm:$0xff]
  %v742 = vld [vmem:[%s3 + $0x40] sm:$0xff]
  %v743 = vld [vmem:[%s3 + $0x48] sm:$0xff]
  %v744 = vld [vmem:[%s3 + $0x50] sm:$0xff]
  %v745 = vld [vmem:[%s3 + $0x58] sm:$0xff]
  %v746 = vld [vmem:[%s3 + $0x60] sm:$0xff]
  %v747 = vld [vmem:[%s3 + $0x68] sm:$0xff]
  %v748 = vld [vmem:[%s3 + $0x70] sm:$0xff]
  %v749 = vld [vmem:[%s3 + $0x78] sm:$0xff]
  %750 = vmatprep.subr.mxu0 0.0
  %751 = vmatpush1.msra.mxu0 %v749
  %752 = vmatprep.subr.mxu0 0.0
  %753 = vmatpush1.msra.mxu0 %v748
  %754 = vmatprep.subr.mxu0 0.0
  %755 = vmatpush1.msra.mxu0 %v747
  %756 = vmatprep.subr.mxu0 0.0
  %757 = vmatpush1.msra.mxu0 %v746
  %758 = vmatprep.subr.mxu0 0.0
  %759 = vmatpush1.msra.mxu0 %v745
  %760 = vmatprep.subr.mxu0 0.0
  %761 = vmatpush1.msra.mxu0 %v744
  %762 = vmatprep.subr.mxu0 0.0
  %763 = vmatpush1.msra.mxu0 %v743
  %764 = vmatprep.subr.mxu0 0.0
  %765 = vmatpush1.msra.mxu0 %v742
  %766 = vmatprep.subr.mxu0 0.0
  %767 = vmatpush1.msra.mxu0 %v741
  %768 = vmatprep.subr.mxu0 0.0
  %769 = vmatpush1.msra.mxu0 %v740
  %770 = vmatprep.subr.mxu0 0.0
  %771 = vmatpush1.msra.mxu0 %v739
  %772 = vmatprep.subr.mxu0 0.0
  %773 = vmatpush1.msra.mxu0 %v738
  %774 = vmatprep.subr.mxu0 0.0
  %775 = vmatpush1.msra.mxu0 %v737
  %776 = vmatprep.subr.mxu0 0.0
  %777 = vmatpush1.msra.mxu0 %v736
  %778 = vmatprep.subr.mxu0 0.0
  %779 = vmatpush1.msra.mxu0 %v735
  %780 = vmatprep.subr.mxu0 0.0
  %781 = vmatpush1.msra.mxu0 %v734
  %782 = vmatprep.subr.mxu0 0.0
  %783 = vmatpush2.msra.mxu0 0.0
  %784 = vmatprep.subr.mxu0 0.0
  %785 = vmatpush2.msra.mxu0 0.0
  %786 = vmatprep.subr.mxu0 0.0
  %787 = vmatpush2.msra.mxu0 0.0
  %788 = vmatprep.subr.mxu0 0.0
  %789 = vmatpush2.msra.mxu0 0.0
  %790 = vmatprep.subr.mxu0 0.0
  %791 = vmatpush2.msra.mxu0 0.0
  %792 = vmatprep.subr.mxu0 0.0
  %793 = vmatpush2.msra.mxu0 0.0
  %794 = vmatprep.subr.mxu0 0.0
  %795 = vmatpush2.msra.mxu0 0.0
  %796 = vmatprep.subr.mxu0 0.0
  %797 = vmatpush2.msra.mxu0 0.0
  %798 = vmatprep.subr.mxu0 0.0
  %799 = vmatpush2.msra.mxu0 0.0
  %800 = vmatprep.subr.mxu0 0.0
  %801 = vmatpush2.msra.mxu0 0.0
  %802 = vmatprep.subr.mxu0 0.0
  %803 = vmatpush2.msra.mxu0 0.0
  %804 = vmatprep.subr.mxu0 0.0
  %805 = vmatpush2.msra.mxu0 0.0
  %806 = vmatprep.subr.mxu0 0.0
  %807 = vmatpush2.msra.mxu0 0.0
  %808 = vmatprep.subr.mxu0 0.0
  %809 = vmatpush2.msra.mxu0 0.0
  %810 = vmatprep.subr.mxu0 0.0
  %811 = vmatpush2.msra.mxu0 0.0
  %812 = vmatprep.subr.mxu0 0.0
  %813 = vmatpush2.msra.mxu0 0.0
  %814 = vmatprep.mubr.f32.mxu0 0.0
  %815 = vmatmul.mubr.f32.gmra.mxu0 %v729
  %v816 = vpop.f32.mrf.mxu0
  %v817 = vadd.f32 0.0, %v816
  %v818 = vpop.f32.mrf.mxu0
  %819 = vdwg.mxu0
  %v820 = vadd.f32 %v733, %v817
  %v821 = vtanh.pop %v820
  %s822 = scalar_lea.vmem [#allocation3], 48
  %823 = vst [vmem:[%s822] sm:$0xff] %v821
  %s824 = scalar_lea.vmem [#allocation2], 56
  %v825 = vld [vmem:[%s824] sm:$0xff]
  %v826 = vld [vmem:[%s3] sm:$0xff]
  %v827 = vld [vmem:[%s3 + $0x8] sm:$0xff]
  %v828 = vld [vmem:[%s3 + $0x10] sm:$0xff]
  %v829 = vld [vmem:[%s3 + $0x18] sm:$0xff]
  %v830 = vld [vmem:[%s3 + $0x20] sm:$0xff]
  %v831 = vld [vmem:[%s3 + $0x28] sm:$0xff]
  %v832 = vld [vmem:[%s3 + $0x30] sm:$0xff]
  %v833 = vld [vmem:[%s3 + $0x38] sm:$0xff]
  %v834 = vld [vmem:[%s3 + $0x40] sm:$0xff]
  %v835 = vld [vmem:[%s3 + $0x48] sm:$0xff]
  %v836 = vld [vmem:[%s3 + $0x50] sm:$0xff]
  %v837 = vld [vmem:[%s3 + $0x58] sm:$0xff]
  %v838 = vld [vmem:[%s3 + $0x60] sm:$0xff]
  %v839 = vld [vmem:[%s3 + $0x68] sm:$0xff]
  %v840 = vld [vmem:[%s3 + $0x70] sm:$0xff]
  %v841 = vld [vmem:[%s3 + $0x78] sm:$0xff]
  %842 = vmatprep.subr.mxu0 0.0
  %843 = vmatpush1.msra.mxu0 %v841
  %844 = vmatprep.subr.mxu0 0.0
  %845 = vmatpush1.msra.mxu0 %v840
  %846 = vmatprep.subr.mxu0 0.0
  %847 = vmatpush1.msra.mxu0 %v839
  %848 = vmatprep.subr.mxu0 0.0
  %849 = vmatpush1.msra.mxu0 %v838
  %850 = vmatprep.subr.mxu0 0.0
  %851 = vmatpush1.msra.mxu0 %v837
  %852 = vmatprep.subr.mxu0 0.0
  %853 = vmatpush1.msra.mxu0 %v836
  %854 = vmatprep.subr.mxu0 0.0
  %855 = vmatpush1.msra.mxu0 %v835
  %856 = vmatprep.subr.mxu0 0.0
  %857 = vmatpush1.msra.mxu0 %v834
  %858 = vmatprep.subr.mxu0 0.0
  %859 = vmatpush1.msra.mxu0 %v833
  %860 = vmatprep.subr.mxu0 0.0
  %861 = vmatpush1.msra.mxu0 %v832
  %862 = vmatprep.subr.mxu0 0.0
  %863 = vmatpush1.msra.mxu0 %v831
  %864 = vmatprep.subr.mxu0 0.0
  %865 = vmatpush1.msra.mxu0 %v830
  %866 = vmatprep.subr.mxu0 0.0
  %867 = vmatpush1.msra.mxu0 %v829
  %868 = vmatprep.subr.mxu0 0.0
  %869 = vmatpush1.msra.mxu0 %v828
  %870 = vmatprep.subr.mxu0 0.0
  %871 = vmatpush1.msra.mxu0 %v827
  %872 = vmatprep.subr.mxu0 0.0
  %873 = vmatpush1.msra.mxu0 %v826
  %874 = vmatprep.subr.mxu0 0.0
  %875 = vmatpush2.msra.mxu0 0.0
  %876 = vmatprep.subr.mxu0 0.0
  %877 = vmatpush2.msra.mxu0 0.0
  %878 = vmatprep.subr.mxu0 0.0
  %879 = vmatpush2.msra.mxu0 0.0
  %880 = vmatprep.subr.mxu0 0.0
  %881 = vmatpush2.msra.mxu0 0.0
  %882 = vmatprep.subr.mxu0 0.0
  %883 = vmatpush2.msra.mxu0 0.0
  %884 = vmatprep.subr.mxu0 0.0
  %885 = vmatpush2.msra.mxu0 0.0
  %886 = vmatprep.subr.mxu0 0.0
  %887 = vmatpush2.msra.mxu0 0.0
  %888 = vmatprep.subr.mxu0 0.0
  %889 = vmatpush2.msra.mxu0 0.0
  %890 = vmatprep.subr.mxu0 0.0
  %891 = vmatpush2.msra.mxu0 0.0
  %892 = vmatprep.subr.mxu0 0.0
  %893 = vmatpush2.msra.mxu0 0.0
  %894 = vmatprep.subr.mxu0 0.0
  %895 = vmatpush2.msra.mxu0 0.0
  %896 = vmatprep.subr.mxu0 0.0
  %897 = vmatpush2.msra.mxu0 0.0
  %898 = vmatprep.subr.mxu0 0.0
  %899 = vmatpush2.msra.mxu0 0.0
  %900 = vmatprep.subr.mxu0 0.0
  %901 = vmatpush2.msra.mxu0 0.0
  %902 = vmatprep.subr.mxu0 0.0
  %903 = vmatpush2.msra.mxu0 0.0
  %904 = vmatprep.subr.mxu0 0.0
  %905 = vmatpush2.msra.mxu0 0.0
  %906 = vmatprep.mubr.f32.mxu0 0.0
  %907 = vmatmul.mubr.f32.gmra.mxu0 %v821
  %v908 = vpop.f32.mrf.mxu0
  %v909 = vadd.f32 0.0, %v908
  %v910 = vpop.f32.mrf.mxu0
  %911 = vdwg.mxu0
  %v912 = vadd.f32 %v825, %v909
  %v913 = vtanh.pop %v912
  %s914 = scalar_lea.vmem [#allocation3], 56
  %915 = vst [vmem:[%s914] sm:$0xff] %v913
  %v916 = vld [vmem:[#allocation3] sm:$0xff]
  %v917 = vld [vmem:[#allocation3 + $0x8] sm:$0xff]
  %v918 = vld [vmem:[#allocation3 + $0x10] sm:$0xff]
  %v919 = vld [vmem:[#allocation3 + $0x18] sm:$0xff]
  %v920 = vld [vmem:[#allocation3 + $0x20] sm:$0xff]
  %v921 = vld [vmem:[#allocation3 + $0x28] sm:$0xff]
  %v922 = vld [vmem:[#allocation3 + $0x30] sm:$0xff]
  %v923 = vld [vmem:[#allocation3 + $0x38] sm:$0xff]
  %v924 = vld [vmem:[%s2] sm:$0xff]
  %v925 = vld [vmem:[%s2 + $0x8] sm:$0xff]
  %v926 = vld [vmem:[%s2 + $0x10] sm:$0xff]
  %v927 = vld [vmem:[%s2 + $0x18] sm:$0xff]
  %v928 = vld [vmem:[%s2 + $0x20] sm:$0xff]
  %v929 = vld [vmem:[%s2 + $0x28] sm:$0xff]
  %v930 = vld [vmem:[%s2 + $0x30] sm:$0xff]
  %v931 = vld [vmem:[%s2 + $0x38] sm:$0xff]
  %v932 = vld [vmem:[%s2 + $0x40] sm:$0xff]
  %v933 = vld [vmem:[%s2 + $0x48] sm:$0xff]
  %v934 = vld [vmem:[%s2 + $0x50] sm:$0xff]
  %v935 = vld [vmem:[%s2 + $0x58] sm:$0xff]
  %v936 = vld [vmem:[%s2 + $0x60] sm:$0xff]
  %v937 = vld [vmem:[%s2 + $0x68] sm:$0xff]
  %v938 = vld [vmem:[%s2 + $0x70] sm:$0xff]
  %v939 = vld [vmem:[%s2 + $0x78] sm:$0xff]
  %s940 = scalar_lea.vmem %s4, 1
  %v941 = vld [vmem:[%s940] sm:$0x1]
  %v943 = vlaneseq
  %v944 = vshrl.u32 %v943, 7
  %v945 = vsub.s32 0, %v944
  %v946 = vrot.slane %v941, %v945
  %948 = vmatprep.subr.mxu0 0.0
  %949 = vmatpush1.msra.mxu0 %v939
  %950 = vmatprep.subr.mxu0 0.0
  %951 = vmatpush1.msra.mxu0 %v938
  %952 = vmatprep.subr.mxu0 0.0
  %953 = vmatpush1.msra.mxu0 %v937
  %954 = vmatprep.subr.mxu0 0.0
  %955 = vmatpush1.msra.mxu0 %v936
  %956 = vmatprep.subr.mxu0 0.0
  %957 = vmatpush1.msra.mxu0 %v935
  %958 = vmatprep.subr.mxu0 0.0
  %959 = vmatpush1.msra.mxu0 %v934
  %960 = vmatprep.subr.mxu0 0.0
  %961 = vmatpush1.msra.mxu0 %v933
  %962 = vmatprep.subr.mxu0 0.0
  %963 = vmatpush1.msra.mxu0 %v932
  %964 = vmatprep.subr.mxu0 0.0
  %965 = vmatpush1.msra.mxu0 %v931
  %966 = vmatprep.subr.mxu0 0.0
  %967 = vmatpush1.msra.mxu0 %v930
  %968 = vmatprep.subr.mxu0 0.0
  %969 = vmatpush1.msra.mxu0 %v929
  %970 = vmatprep.subr.mxu0 0.0
  %971 = vmatpush1.msra.mxu0 %v928
  %972 = vmatprep.subr.mxu0 0.0
  %973 = vmatpush1.msra.mxu0 %v927
  %974 = vmatprep.subr.mxu0 0.0
  %975 = vmatpush1.msra.mxu0 %v926
  %976 = vmatprep.subr.mxu0 0.0
  %977 = vmatpush1.msra.mxu0 %v925
  %978 = vmatprep.subr.mxu0 0.0
  %979 = vmatpush1.msra.mxu0 %v924
  %980 = vmatprep.subr.mxu0 0.0
  %981 = vmatpush2.msra.mxu0 0.0
  %982 = vmatprep.subr.mxu0 0.0
  %983 = vmatpush2.msra.mxu0 0.0
  %984 = vmatprep.subr.mxu0 0.0
  %985 = vmatpush2.msra.mxu0 0.0
  %986 = vmatprep.subr.mxu0 0.0
  %987 = vmatpush2.msra.mxu0 0.0
  %988 = vmatprep.subr.mxu0 0.0
  %989 = vmatpush2.msra.mxu0 0.0
  %990 = vmatprep.subr.mxu0 0.0
  %991 = vmatpush2.msra.mxu0 0.0
  %992 = vmatprep.subr.mxu0 0.0
  %993 = vmatpush2.msra.mxu0 0.0
  %994 = vmatprep.subr.mxu0 0.0
  %995 = vmatpush2.msra.mxu0 0.0
  %996 = vmatprep.subr.mxu0 0.0
  %997 = vmatpush2.msra.mxu0 0.0
  %998 = vmatprep.subr.mxu0 0.0
  %999 = vmatpush2.msra.mxu0 0.0
  %1000 = vmatprep.subr.mxu0 0.0
  %1001 = vmatpush2.msra.mxu0 0.0
  %1002 = vmatprep.subr.mxu0 0.0
  %1003 = vmatpush2.msra.mxu0 0.0
  %1004 = vmatprep.subr.mxu0 0.0
  %1005 = vmatpush2.msra.mxu0 0.0
  %1006 = vmatprep.subr.mxu0 0.0
  %1007 = vmatpush2.msra.mxu0 0.0
  %1008 = vmatprep.subr.mxu0 0.0
  %1009 = vmatpush2.msra.mxu0 0.0
  %1010 = vmatprep.subr.mxu0 0.0
  %1011 = vmatpush2.msra.mxu0 0.0
  %1012 = vmatprep.mubr.f32.mxu0 0.0
  %1013 = vmatmul.mubr.f32.gmra.mxu0 %v916
  %v1014 = vpop.f32.mrf.mxu0
  %v1015 = vadd.f32 %v946, %v1014
  %v1016 = vpop.f32.mrf.mxu0
  %1017 = vmatprep.mubr.f32.mxu0 0.0
  %1018 = vmatmul.mubr.f32.gmra.mxu0 %v917
  %v1019 = vpop.f32.mrf.mxu0
  %v1020 = vadd.f32 %v946, %v1019
  %v1021 = vpop.f32.mrf.mxu0
  %1022 = vmatprep.mubr.f32.mxu0 0.0
  %1023 = vmatmul.mubr.f32.gmra.mxu0 %v918
  %v1024 = vpop.f32.mrf.mxu0
  %v1025 = vadd.f32 %v946, %v1024
  %v1026 = vpop.f32.mrf.mxu0
  %1027 = vmatprep.mubr.f32.mxu0 0.0
  %1028 = vmatmul.mubr.f32.gmra.mxu0 %v919
  %v1029 = vpop.f32.mrf.mxu0
  %v1030 = vadd.f32 %v946, %v1029
  %v1031 = vpop.f32.mrf.mxu0
  %1032 = vmatprep.mubr.f32.mxu0 0.0
  %1033 = vmatmul.mubr.f32.gmra.mxu0 %v920
  %v1034 = vpop.f32.mrf.mxu0
  %v1035 = vadd.f32 %v946, %v1034
  %v1036 = vpop.f32.mrf.mxu0
  %1037 = vmatprep.mubr.f32.mxu0 0.0
  %1038 = vmatmul.mubr.f32.gmra.mxu0 %v921
  %v1039 = vpop.f32.mrf.mxu0
  %v1040 = vadd.f32 %v946, %v1039
  %v1041 = vpop.f32.mrf.mxu0
  %1042 = vmatprep.mubr.f32.mxu0 0.0
  %1043 = vmatmul.mubr.f32.gmra.mxu0 %v922
  %v1044 = vpop.f32.mrf.mxu0
  %v1045 = vadd.f32 %v946, %v1044
  %v1046 = vpop.f32.mrf.mxu0
  %1047 = vmatprep.mubr.f32.mxu0 0.0
  %1048 = vmatmul.mubr.f32.gmra.mxu0 %v923
  %v1049 = vpop.f32.mrf.mxu0
  %v1050 = vadd.f32 %v946, %v1049
  %v1051 = vpop.f32.mrf.mxu0
  %1052 = vdwg.mxu0
  %1053 = vst [vmem:[#allocation2] sm:$0xff] %v1015
  %1054 = vst [vmem:[#allocation2 + $0x8] sm:$0xff] %v1020
  %1055 = vst [vmem:[#allocation2 + $0x10] sm:$0xff] %v1025
  %1056 = vst [vmem:[#allocation2 + $0x18] sm:$0xff] %v1030
  %1057 = vst [vmem:[#allocation2 + $0x20] sm:$0xff] %v1035
  %1058 = vst [vmem:[#allocation2 + $0x28] sm:$0xff] %v1040
  %1059 = vst [vmem:[#allocation2 + $0x30] sm:$0xff] %v1045
  %1060 = vst [vmem:[#allocation2 + $0x38] sm:$0xff] %v1050
  %v1061 = vld [vmem:[#allocation2] sm:$0xff]
  %s1062 = scalar_lea.vmem %s3, 128
  %v1063 = vld [vmem:[%s1062] sm:$0xff]
  %v1064 = vld [vmem:[%s1062 + $0x8] sm:$0xff]
  %v1065 = vld [vmem:[%s1062 + $0x10] sm:$0xff]
  %v1066 = vld [vmem:[%s1062 + $0x18] sm:$0xff]
  %v1067 = vld [vmem:[%s1062 + $0x20] sm:$0xff]
  %v1068 = vld [vmem:[%s1062 + $0x28] sm:$0xff]
  %v1069 = vld [vmem:[%s1062 + $0x30] sm:$0xff]
  %v1070 = vld [vmem:[%s1062 + $0x38] sm:$0xff]
  %v1071 = vld [vmem:[%s1062 + $0x40] sm:$0xff]
  %v1072 = vld [vmem:[%s1062 + $0x48] sm:$0xff]
  %v1073 = vld [vmem:[%s1062 + $0x50] sm:$0xff]
  %v1074 = vld [vmem:[%s1062 + $0x58] sm:$0xff]
  %v1075 = vld [vmem:[%s1062 + $0x60] sm:$0xff]
  %v1076 = vld [vmem:[%s1062 + $0x68] sm:$0xff]
  %v1077 = vld [vmem:[%s1062 + $0x70] sm:$0xff]
  %v1078 = vld [vmem:[%s1062 + $0x78] sm:$0xff]
  %1079 = vmatprep.subr.mxu0 0.0
  %1080 = vmatpush1.msra.mxu0 %v1078
  %1081 = vmatprep.subr.mxu0 0.0
  %1082 = vmatpush1.msra.mxu0 %v1077
  %1083 = vmatprep.subr.mxu0 0.0
  %1084 = vmatpush1.msra.mxu0 %v1076
  %1085 = vmatprep.subr.mxu0 0.0
  %1086 = vmatpush1.msra.mxu0 %v1075
  %1087 = vmatprep.subr.mxu0 0.0
  %1088 = vmatpush1.msra.mxu0 %v1074
  %1089 = vmatprep.subr.mxu0 0.0
  %1090 = vmatpush1.msra.mxu0 %v1073
  %1091 = vmatprep.subr.mxu0 0.0
  %1092 = vmatpush1.msra.mxu0 %v1072
  %1093 = vmatprep.subr.mxu0 0.0
  %1094 = vmatpush1.msra.mxu0 %v1071
  %1095 = vmatprep.subr.mxu0 0.0
  %1096 = vmatpush1.msra.mxu0 %v1070
  %1097 = vmatprep.subr.mxu0 0.0
  %1098 = vmatpush1.msra.mxu0 %v1069
  %1099 = vmatprep.subr.mxu0 0.0
  %1100 = vmatpush1.msra.mxu0 %v1068
  %1101 = vmatprep.subr.mxu0 0.0
  %1102 = vmatpush1.msra.mxu0 %v1067
  %1103 = vmatprep.subr.mxu0 0.0
  %1104 = vmatpush1.msra.mxu0 %v1066
  %1105 = vmatprep.subr.mxu0 0.0
  %1106 = vmatpush1.msra.mxu0 %v1065
  %1107 = vmatprep.subr.mxu0 0.0
  %1108 = vmatpush1.msra.mxu0 %v1064
  %1109 = vmatprep.subr.mxu0 0.0
  %1110 = vmatpush1.msra.mxu0 %v1063
  %1111 = vmatprep.subr.mxu0 0.0
  %1112 = vmatpush2.msra.mxu0 0.0
  %1113 = vmatprep.subr.mxu0 0.0
  %1114 = vmatpush2.msra.mxu0 0.0
  %1115 = vmatprep.subr.mxu0 0.0
  %1116 = vmatpush2.msra.mxu0 0.0
  %1117 = vmatprep.subr.mxu0 0.0
  %1118 = vmatpush2.msra.mxu0 0.0
  %1119 = vmatprep.subr.mxu0 0.0
  %1120 = vmatpush2.msra.mxu0 0.0
  %1121 = vmatprep.subr.mxu0 0.0
  %1122 = vmatpush2.msra.mxu0 0.0
  %1123 = vmatprep.subr.mxu0 0.0
  %1124 = vmatpush2.msra.mxu0 0.0
  %1125 = vmatprep.subr.mxu0 0.0
  %1126 = vmatpush2.msra.mxu0 0.0
  %1127 = vmatprep.subr.mxu0 0.0
  %1128 = vmatpush2.msra.mxu0 0.0
  %1129 = vmatprep.subr.mxu0 0.0
  %1130 = vmatpush2.msra.mxu0 0.0
  %1131 = vmatprep.subr.mxu0 0.0
  %1132 = vmatpush2.msra.mxu0 0.0
  %1133 = vmatprep.subr.mxu0 0.0
  %1134 = vmatpush2.msra.mxu0 0.0
  %1135 = vmatprep.subr.mxu0 0.0
  %1136 = vmatpush2.msra.mxu0 0.0
  %1137 = vmatprep.subr.mxu0 0.0
  %1138 = vmatpush2.msra.mxu0 0.0
  %1139 = vmatprep.subr.mxu0 0.0
  %1140 = vmatpush2.msra.mxu0 0.0
  %1141 = vmatprep.subr.mxu0 0.0
  %1142 = vmatpush2.msra.mxu0 0.0
  %1143 = vmatprep.mubr.f32.mxu0 0.0
  %1144 = vmatmul.mubr.f32.gmra.mxu0 0.0
  %v1145 = vpop.f32.mrf.mxu0
  %v1146 = vadd.f32 0.0, %v1145
  %v1147 = vpop.f32.mrf.mxu0
  %1148 = vdwg.mxu0
  %v1149 = vadd.f32 %v1061, %v1146
  %v1150 = vtanh.pop %v1149
  %v1151 = vld [vmem:[%s272] sm:$0xff]
  %1152 = vmatprep.subr.mxu0 0.0
  %1153 = vmatpush1.msra.mxu0 %v1078
  %1154 = vmatprep.subr.mxu0 0.0
  %1155 = vmatpush1.msra.mxu0 %v1077
  %1156 = vmatprep.subr.mxu0 0.0
  %1157 = vmatpush1.msra.mxu0 %v1076
  %1158 = vmatprep.subr.mxu0 0.0
  %1159 = vmatpush1.msra.mxu0 %v1075
  %1160 = vmatprep.subr.mxu0 0.0
  %1161 = vmatpush1.msra.mxu0 %v1074
  %1162 = vmatprep.subr.mxu0 0.0
  %1163 = vmatpush1.msra.mxu0 %v1073
  %1164 = vmatprep.subr.mxu0 0.0
  %1165 = vmatpush1.msra.mxu0 %v1072
  %1166 = vmatprep.subr.mxu0 0.0
  %1167 = vmatpush1.msra.mxu0 %v1071
  %1168 = vmatprep.subr.mxu0 0.0
  %1169 = vmatpush1.msra.mxu0 %v1070
  %1170 = vmatprep.subr.mxu0 0.0
  %1171 = vmatpush1.msra.mxu0 %v1069
  %1172 = vmatprep.subr.mxu0 0.0
  %1173 = vmatpush1.msra.mxu0 %v1068
  %1174 = vmatprep.subr.mxu0 0.0
  %1175 = vmatpush1.msra.mxu0 %v1067
  %1176 = vmatprep.subr.mxu0 0.0
  %1177 = vmatpush1.msra.mxu0 %v1066
  %1178 = vmatprep.subr.mxu0 0.0
  %1179 = vmatpush1.msra.mxu0 %v1065
  %1180 = vmatprep.subr.mxu0 0.0
  %1181 = vmatpush1.msra.mxu0 %v1064
  %1182 = vmatprep.subr.mxu0 0.0
  %1183 = vmatpush1.msra.mxu0 %v1063
  %1184 = vmatprep.subr.mxu0 0.0
  %1185 = vmatpush2.msra.mxu0 0.0
  %1186 = vmatprep.subr.mxu0 0.0
  %1187 = vmatpush2.msra.mxu0 0.0
  %1188 = vmatprep.subr.mxu0 0.0
  %1189 = vmatpush2.msra.mxu0 0.0
  %1190 = vmatprep.subr.mxu0 0.0
  %1191 = vmatpush2.msra.mxu0 0.0
  %1192 = vmatprep.subr.mxu0 0.0
  %1193 = vmatpush2.msra.mxu0 0.0
  %1194 = vmatprep.subr.mxu0 0.0
  %1195 = vmatpush2.msra.mxu0 0.0
  %1196 = vmatprep.subr.mxu0 0.0
  %1197 = vmatpush2.msra.mxu0 0.0
  %1198 = vmatprep.subr.mxu0 0.0
  %1199 = vmatpush2.msra.mxu0 0.0
  %1200 = vmatprep.subr.mxu0 0.0
  %1201 = vmatpush2.msra.mxu0 0.0
  %1202 = vmatprep.subr.mxu0 0.0
  %1203 = vmatpush2.msra.mxu0 0.0
  %1204 = vmatprep.subr.mxu0 0.0
  %1205 = vmatpush2.msra.mxu0 0.0
  %1206 = vmatprep.subr.mxu0 0.0
  %1207 = vmatpush2.msra.mxu0 0.0
  %1208 = vmatprep.subr.mxu0 0.0
  %1209 = vmatpush2.msra.mxu0 0.0
  %1210 = vmatprep.subr.mxu0 0.0
  %1211 = vmatpush2.msra.mxu0 0.0
  %1212 = vmatprep.subr.mxu0 0.0
  %1213 = vmatpush2.msra.mxu0 0.0
  %1214 = vmatprep.subr.mxu0 0.0
  %1215 = vmatpush2.msra.mxu0 0.0
  %1216 = vmatprep.mubr.f32.mxu0 0.0
  %1217 = vmatmul.mubr.f32.gmra.mxu0 %v1150
  %v1218 = vpop.f32.mrf.mxu0
  %v1219 = vadd.f32 0.0, %v1218
  %v1220 = vpop.f32.mrf.mxu0
  %1221 = vdwg.mxu0
  %v1222 = vadd.f32 %v1151, %v1219
  %v1223 = vtanh.pop %v1222
  %v1224 = vld [vmem:[%s364] sm:$0xff]
  %1225 = vmatprep.subr.mxu0 0.0
  %1226 = vmatpush1.msra.mxu0 %v1078
  %1227 = vmatprep.subr.mxu0 0.0
  %1228 = vmatpush1.msra.mxu0 %v1077
  %1229 = vmatprep.subr.mxu0 0.0
  %1230 = vmatpush1.msra.mxu0 %v1076
  %1231 = vmatprep.subr.mxu0 0.0
  %1232 = vmatpush1.msra.mxu0 %v1075
  %1233 = vmatprep.subr.mxu0 0.0
  %1234 = vmatpush1.msra.mxu0 %v1074
  %1235 = vmatprep.subr.mxu0 0.0
  %1236 = vmatpush1.msra.mxu0 %v1073
  %1237 = vmatprep.subr.mxu0 0.0
  %1238 = vmatpush1.msra.mxu0 %v1072
  %1239 = vmatprep.subr.mxu0 0.0
  %1240 = vmatpush1.msra.mxu0 %v1071
  %1241 = vmatprep.subr.mxu0 0.0
  %1242 = vmatpush1.msra.mxu0 %v1070
  %1243 = vmatprep.subr.mxu0 0.0
  %1244 = vmatpush1.msra.mxu0 %v1069
  %1245 = vmatprep.subr.mxu0 0.0
  %1246 = vmatpush1.msra.mxu0 %v1068
  %1247 = vmatprep.subr.mxu0 0.0
  %1248 = vmatpush1.msra.mxu0 %v1067
  %1249 = vmatprep.subr.mxu0 0.0
  %1250 = vmatpush1.msra.mxu0 %v1066
  %1251 = vmatprep.subr.mxu0 0.0
  %1252 = vmatpush1.msra.mxu0 %v1065
  %1253 = vmatprep.subr.mxu0 0.0
  %1254 = vmatpush1.msra.mxu0 %v1064
  %1255 = vmatprep.subr.mxu0 0.0
  %1256 = vmatpush1.msra.mxu0 %v1063
  %1257 = vmatprep.subr.mxu0 0.0
  %1258 = vmatpush2.msra.mxu0 0.0
  %1259 = vmatprep.subr.mxu0 0.0
  %1260 = vmatpush2.msra.mxu0 0.0
  %1261 = vmatprep.subr.mxu0 0.0
  %1262 = vmatpush2.msra.mxu0 0.0
  %1263 = vmatprep.subr.mxu0 0.0
  %1264 = vmatpush2.msra.mxu0 0.0
  %1265 = vmatprep.subr.mxu0 0.0
  %1266 = vmatpush2.msra.mxu0 0.0
  %1267 = vmatprep.subr.mxu0 0.0
  %1268 = vmatpush2.msra.mxu0 0.0
  %1269 = vmatprep.subr.mxu0 0.0
  %1270 = vmatpush2.msra.mxu0 0.0
  %1271 = vmatprep.subr.mxu0 0.0
  %1272 = vmatpush2.msra.mxu0 0.0
  %1273 = vmatprep.subr.mxu0 0.0
  %1274 = vmatpush2.msra.mxu0 0.0
  %1275 = vmatprep.subr.mxu0 0.0
  %1276 = vmatpush2.msra.mxu0 0.0
  %1277 = vmatprep.subr.mxu0 0.0
  %1278 = vmatpush2.msra.mxu0 0.0
  %1279 = vmatprep.subr.mxu0 0.0
  %1280 = vmatpush2.msra.mxu0 0.0
  %1281 = vmatprep.subr.mxu0 0.0
  %1282 = vmatpush2.msra.mxu0 0.0
  %1283 = vmatprep.subr.mxu0 0.0
  %1284 = vmatpush2.msra.mxu0 0.0
  %1285 = vmatprep.subr.mxu0 0.0
  %1286 = vmatpush2.msra.mxu0 0.0
  %1287 = vmatprep.subr.mxu0 0.0
  %1288 = vmatpush2.msra.mxu0 0.0
  %1289 = vmatprep.mubr.f32.mxu0 0.0
  %1290 = vmatmul.mubr.f32.gmra.mxu0 %v1223
  %v1291 = vpop.f32.mrf.mxu0
  %v1292 = vadd.f32 0.0, %v1291
  %v1293 = vpop.f32.mrf.mxu0
  %1294 = vdwg.mxu0
  %v1295 = vadd.f32 %v1224, %v1292
  %v1296 = vtanh.pop %v1295
  %v1297 = vld [vmem:[%s456] sm:$0xff]
  %1298 = vmatprep.subr.mxu0 0.0
  %1299 = vmatpush1.msra.mxu0 %v1078
  %1300 = vmatprep.subr.mxu0 0.0
  %1301 = vmatpush1.msra.mxu0 %v1077
  %1302 = vmatprep.subr.mxu0 0.0
  %1303 = vmatpush1.msra.mxu0 %v1076
  %1304 = vmatprep.subr.mxu0 0.0
  %1305 = vmatpush1.msra.mxu0 %v1075
  %1306 = vmatprep.subr.mxu0 0.0
  %1307 = vmatpush1.msra.mxu0 %v1074
  %1308 = vmatprep.subr.mxu0 0.0
  %1309 = vmatpush1.msra.mxu0 %v1073
  %1310 = vmatprep.subr.mxu0 0.0
  %1311 = vmatpush1.msra.mxu0 %v1072
  %1312 = vmatprep.subr.mxu0 0.0
  %1313 = vmatpush1.msra.mxu0 %v1071
  %1314 = vmatprep.subr.mxu0 0.0
  %1315 = vmatpush1.msra.mxu0 %v1070
  %1316 = vmatprep.subr.mxu0 0.0
  %1317 = vmatpush1.msra.mxu0 %v1069
  %1318 = vmatprep.subr.mxu0 0.0
  %1319 = vmatpush1.msra.mxu0 %v1068
  %1320 = vmatprep.subr.mxu0 0.0
  %1321 = vmatpush1.msra.mxu0 %v1067
  %1322 = vmatprep.subr.mxu0 0.0
  %1323 = vmatpush1.msra.mxu0 %v1066
  %1324 = vmatprep.subr.mxu0 0.0
  %1325 = vmatpush1.msra.mxu0 %v1065
  %1326 = vmatprep.subr.mxu0 0.0
  %1327 = vmatpush1.msra.mxu0 %v1064
  %1328 = vmatprep.subr.mxu0 0.0
  %1329 = vmatpush1.msra.mxu0 %v1063
  %1330 = vmatprep.subr.mxu0 0.0
  %1331 = vmatpush2.msra.mxu0 0.0
  %1332 = vmatprep.subr.mxu0 0.0
  %1333 = vmatpush2.msra.mxu0 0.0
  %1334 = vmatprep.subr.mxu0 0.0
  %1335 = vmatpush2.msra.mxu0 0.0
  %1336 = vmatprep.subr.mxu0 0.0
  %1337 = vmatpush2.msra.mxu0 0.0
  %1338 = vmatprep.subr.mxu0 0.0
  %1339 = vmatpush2.msra.mxu0 0.0
  %1340 = vmatprep.subr.mxu0 0.0
  %1341 = vmatpush2.msra.mxu0 0.0
  %1342 = vmatprep.subr.mxu0 0.0
  %1343 = vmatpush2.msra.mxu0 0.0
  %1344 = vmatprep.subr.mxu0 0.0
  %1345 = vmatpush2.msra.mxu0 0.0
  %1346 = vmatprep.subr.mxu0 0.0
  %1347 = vmatpush2.msra.mxu0 0.0
  %1348 = vmatprep.subr.mxu0 0.0
  %1349 = vmatpush2.msra.mxu0 0.0
  %1350 = vmatprep.subr.mxu0 0.0
  %1351 = vmatpush2.msra.mxu0 0.0
  %1352 = vmatprep.subr.mxu0 0.0
  %1353 = vmatpush2.msra.mxu0 0.0
  %1354 = vmatprep.subr.mxu0 0.0
  %1355 = vmatpush2.msra.mxu0 0.0
  %1356 = vmatprep.subr.mxu0 0.0
  %1357 = vmatpush2.msra.mxu0 0.0
  %1358 = vmatprep.subr.mxu0 0.0
  %1359 = vmatpush2.msra.mxu0 0.0
  %1360 = vmatprep.subr.mxu0 0.0
  %1361 = vmatpush2.msra.mxu0 0.0
  %1362 = vmatprep.mubr.f32.mxu0 0.0
  %1363 = vmatmul.mubr.f32.gmra.mxu0 %v1296
  %v1364 = vpop.f32.mrf.mxu0
  %v1365 = vadd.f32 0.0, %v1364
  %v1366 = vpop.f32.mrf.mxu0
  %1367 = vdwg.mxu0
  %v1368 = vadd.f32 %v1297, %v1365
  %v1369 = vtanh.pop %v1368
  %v1370 = vld [vmem:[%s548] sm:$0xff]
  %1371 = vmatprep.subr.mxu0 0.0
  %1372 = vmatpush1.msra.mxu0 %v1078
  %1373 = vmatprep.subr.mxu0 0.0
  %1374 = vmatpush1.msra.mxu0 %v1077
  %1375 = vmatprep.subr.mxu0 0.0
  %1376 = vmatpush1.msra.mxu0 %v1076
  %1377 = vmatprep.subr.mxu0 0.0
  %1378 = vmatpush1.msra.mxu0 %v1075
  %1379 = vmatprep.subr.mxu0 0.0
  %1380 = vmatpush1.msra.mxu0 %v1074
  %1381 = vmatprep.subr.mxu0 0.0
  %1382 = vmatpush1.msra.mxu0 %v1073
  %1383 = vmatprep.subr.mxu0 0.0
  %1384 = vmatpush1.msra.mxu0 %v1072
  %1385 = vmatprep.subr.mxu0 0.0
  %1386 = vmatpush1.msra.mxu0 %v1071
  %1387 = vmatprep.subr.mxu0 0.0
  %1388 = vmatpush1.msra.mxu0 %v1070
  %1389 = vmatprep.subr.mxu0 0.0
  %1390 = vmatpush1.msra.mxu0 %v1069
  %1391 = vmatprep.subr.mxu0 0.0
  %1392 = vmatpush1.msra.mxu0 %v1068
  %1393 = vmatprep.subr.mxu0 0.0
  %1394 = vmatpush1.msra.mxu0 %v1067
  %1395 = vmatprep.subr.mxu0 0.0
  %1396 = vmatpush1.msra.mxu0 %v1066
  %1397 = vmatprep.subr.mxu0 0.0
  %1398 = vmatpush1.msra.mxu0 %v1065
  %1399 = vmatprep.subr.mxu0 0.0
  %1400 = vmatpush1.msra.mxu0 %v1064
  %1401 = vmatprep.subr.mxu0 0.0
  %1402 = vmatpush1.msra.mxu0 %v1063
  %1403 = vmatprep.subr.mxu0 0.0
  %1404 = vmatpush2.msra.mxu0 0.0
  %1405 = vmatprep.subr.mxu0 0.0
  %1406 = vmatpush2.msra.mxu0 0.0
  %1407 = vmatprep.subr.mxu0 0.0
  %1408 = vmatpush2.msra.mxu0 0.0
  %1409 = vmatprep.subr.mxu0 0.0
  %1410 = vmatpush2.msra.mxu0 0.0
  %1411 = vmatprep.subr.mxu0 0.0
  %1412 = vmatpush2.msra.mxu0 0.0
  %1413 = vmatprep.subr.mxu0 0.0
  %1414 = vmatpush2.msra.mxu0 0.0
  %1415 = vmatprep.subr.mxu0 0.0
  %1416 = vmatpush2.msra.mxu0 0.0
  %1417 = vmatprep.subr.mxu0 0.0
  %1418 = vmatpush2.msra.mxu0 0.0
  %1419 = vmatprep.subr.mxu0 0.0
  %1420 = vmatpush2.msra.mxu0 0.0
  %1421 = vmatprep.subr.mxu0 0.0
  %1422 = vmatpush2.msra.mxu0 0.0
  %1423 = vmatprep.subr.mxu0 0.0
  %1424 = vmatpush2.msra.mxu0 0.0
  %1425 = vmatprep.subr.mxu0 0.0
  %1426 = vmatpush2.msra.mxu0 0.0
  %1427 = vmatprep.subr.mxu0 0.0
  %1428 = vmatpush2.msra.mxu0 0.0
  %1429 = vmatprep.subr.mxu0 0.0
  %1430 = vmatpush2.msra.mxu0 0.0
  %1431 = vmatprep.subr.mxu0 0.0
  %1432 = vmatpush2.msra.mxu0 0.0
  %1433 = vmatprep.subr.mxu0 0.0
  %1434 = vmatpush2.msra.mxu0 0.0
  %1435 = vmatprep.mubr.f32.mxu0 0.0
  %1436 = vmatmul.mubr.f32.gmra.mxu0 %v1369
  %v1437 = vpop.f32.mrf.mxu0
  %v1438 = vadd.f32 0.0, %v1437
  %v1439 = vpop.f32.mrf.mxu0
  %1440 = vdwg.mxu0
  %v1441 = vadd.f32 %v1370, %v1438
  %v1442 = vtanh.pop %v1441
  %v1443 = vld [vmem:[%s640] sm:$0xff]
  %1444 = vmatprep.subr.mxu0 0.0
  %1445 = vmatpush1.msra.mxu0 %v1078
  %1446 = vmatprep.subr.mxu0 0.0
  %1447 = vmatpush1.msra.mxu0 %v1077
  %1448 = vmatprep.subr.mxu0 0.0
  %1449 = vmatpush1.msra.mxu0 %v1076
  %1450 = vmatprep.subr.mxu0 0.0
  %1451 = vmatpush1.msra.mxu0 %v1075
  %1452 = vmatprep.subr.mxu0 0.0
  %1453 = vmatpush1.msra.mxu0 %v1074
  %1454 = vmatprep.subr.mxu0 0.0
  %1455 = vmatpush1.msra.mxu0 %v1073
  %1456 = vmatprep.subr.mxu0 0.0
  %1457 = vmatpush1.msra.mxu0 %v1072
  %1458 = vmatprep.subr.mxu0 0.0
  %1459 = vmatpush1.msra.mxu0 %v1071
  %1460 = vmatprep.subr.mxu0 0.0
  %1461 = vmatpush1.msra.mxu0 %v1070
  %1462 = vmatprep.subr.mxu0 0.0
  %1463 = vmatpush1.msra.mxu0 %v1069
  %1464 = vmatprep.subr.mxu0 0.0
  %1465 = vmatpush1.msra.mxu0 %v1068
  %1466 = vmatprep.subr.mxu0 0.0
  %1467 = vmatpush1.msra.mxu0 %v1067
  %1468 = vmatprep.subr.mxu0 0.0
  %1469 = vmatpush1.msra.mxu0 %v1066
  %1470 = vmatprep.subr.mxu0 0.0
  %1471 = vmatpush1.msra.mxu0 %v1065
  %1472 = vmatprep.subr.mxu0 0.0
  %1473 = vmatpush1.msra.mxu0 %v1064
  %1474 = vmatprep.subr.mxu0 0.0
  %1475 = vmatpush1.msra.mxu0 %v1063
  %1476 = vmatprep.subr.mxu0 0.0
  %1477 = vmatpush2.msra.mxu0 0.0
  %1478 = vmatprep.subr.mxu0 0.0
  %1479 = vmatpush2.msra.mxu0 0.0
  %1480 = vmatprep.subr.mxu0 0.0
  %1481 = vmatpush2.msra.mxu0 0.0
  %1482 = vmatprep.subr.mxu0 0.0
  %1483 = vmatpush2.msra.mxu0 0.0
  %1484 = vmatprep.subr.mxu0 0.0
  %1485 = vmatpush2.msra.mxu0 0.0
  %1486 = vmatprep.subr.mxu0 0.0
  %1487 = vmatpush2.msra.mxu0 0.0
  %1488 = vmatprep.subr.mxu0 0.0
  %1489 = vmatpush2.msra.mxu0 0.0
  %1490 = vmatprep.subr.mxu0 0.0
  %1491 = vmatpush2.msra.mxu0 0.0
  %1492 = vmatprep.subr.mxu0 0.0
  %1493 = vmatpush2.msra.mxu0 0.0
  %1494 = vmatprep.subr.mxu0 0.0
  %1495 = vmatpush2.msra.mxu0 0.0
  %1496 = vmatprep.subr.mxu0 0.0
  %1497 = vmatpush2.msra.mxu0 0.0
  %1498 = vmatprep.subr.mxu0 0.0
  %1499 = vmatpush2.msra.mxu0 0.0
  %1500 = vmatprep.subr.mxu0 0.0
  %1501 = vmatpush2.msra.mxu0 0.0
  %1502 = vmatprep.subr.mxu0 0.0
  %1503 = vmatpush2.msra.mxu0 0.0
  %1504 = vmatprep.subr.mxu0 0.0
  %1505 = vmatpush2.msra.mxu0 0.0
  %1506 = vmatprep.subr.mxu0 0.0
  %1507 = vmatpush2.msra.mxu0 0.0
  %1508 = vmatprep.mubr.f32.mxu0 0.0
  %1509 = vmatmul.mubr.f32.gmra.mxu0 %v1442
  %v1510 = vpop.f32.mrf.mxu0
  %v1511 = vadd.f32 0.0, %v1510
  %v1512 = vpop.f32.mrf.mxu0
  %1513 = vdwg.mxu0
  %v1514 = vadd.f32 %v1443, %v1511
  %v1515 = vtanh.pop %v1514
  %v1516 = vld [vmem:[%s732] sm:$0xff]
  %1517 = vmatprep.subr.mxu0 0.0
  %1518 = vmatpush1.msra.mxu0 %v1078
  %1519 = vmatprep.subr.mxu0 0.0
  %1520 = vmatpush1.msra.mxu0 %v1077
  %1521 = vmatprep.subr.mxu0 0.0
  %1522 = vmatpush1.msra.mxu0 %v1076
  %1523 = vmatprep.subr.mxu0 0.0
  %1524 = vmatpush1.msra.mxu0 %v1075
  %1525 = vmatprep.subr.mxu0 0.0
  %1526 = vmatpush1.msra.mxu0 %v1074
  %1527 = vmatprep.subr.mxu0 0.0
  %1528 = vmatpush1.msra.mxu0 %v1073
  %1529 = vmatprep.subr.mxu0 0.0
  %1530 = vmatpush1.msra.mxu0 %v1072
  %1531 = vmatprep.subr.mxu0 0.0
  %1532 = vmatpush1.msra.mxu0 %v1071
  %1533 = vmatprep.subr.mxu0 0.0
  %1534 = vmatpush1.msra.mxu0 %v1070
  %1535 = vmatprep.subr.mxu0 0.0
  %1536 = vmatpush1.msra.mxu0 %v1069
  %1537 = vmatprep.subr.mxu0 0.0
  %1538 = vmatpush1.msra.mxu0 %v1068
  %1539 = vmatprep.subr.mxu0 0.0
  %1540 = vmatpush1.msra.mxu0 %v1067
  %1541 = vmatprep.subr.mxu0 0.0
  %1542 = vmatpush1.msra.mxu0 %v1066
  %1543 = vmatprep.subr.mxu0 0.0
  %1544 = vmatpush1.msra.mxu0 %v1065
  %1545 = vmatprep.subr.mxu0 0.0
  %1546 = vmatpush1.msra.mxu0 %v1064
  %1547 = vmatprep.subr.mxu0 0.0
  %1548 = vmatpush1.msra.mxu0 %v1063
  %1549 = vmatprep.subr.mxu0 0.0
  %1550 = vmatpush2.msra.mxu0 0.0
  %1551 = vmatprep.subr.mxu0 0.0
  %1552 = vmatpush2.msra.mxu0 0.0
  %1553 = vmatprep.subr.mxu0 0.0
  %1554 = vmatpush2.msra.mxu0 0.0
  %1555 = vmatprep.subr.mxu0 0.0
  %1556 = vmatpush2.msra.mxu0 0.0
  %1557 = vmatprep.subr.mxu0 0.0
  %1558 = vmatpush2.msra.mxu0 0.0
  %1559 = vmatprep.subr.mxu0 0.0
  %1560 = vmatpush2.msra.mxu0 0.0
  %1561 = vmatprep.subr.mxu0 0.0
  %1562 = vmatpush2.msra.mxu0 0.0
  %1563 = vmatprep.subr.mxu0 0.0
  %1564 = vmatpush2.msra.mxu0 0.0
  %1565 = vmatprep.subr.mxu0 0.0
  %1566 = vmatpush2.msra.mxu0 0.0
  %1567 = vmatprep.subr.mxu0 0.0
  %1568 = vmatpush2.msra.mxu0 0.0
  %1569 = vmatprep.subr.mxu0 0.0
  %1570 = vmatpush2.msra.mxu0 0.0
  %1571 = vmatprep.subr.mxu0 0.0
  %1572 = vmatpush2.msra.mxu0 0.0
  %1573 = vmatprep.subr.mxu0 0.0
  %1574 = vmatpush2.msra.mxu0 0.0
  %1575 = vmatprep.subr.mxu0 0.0
  %1576 = vmatpush2.msra.mxu0 0.0
  %1577 = vmatprep.subr.mxu0 0.0
  %1578 = vmatpush2.msra.mxu0 0.0
  %1579 = vmatprep.subr.mxu0 0.0
  %1580 = vmatpush2.msra.mxu0 0.0
  %1581 = vmatprep.mubr.f32.mxu0 0.0
  %1582 = vmatmul.mubr.f32.gmra.mxu0 %v1515
  %v1583 = vpop.f32.mrf.mxu0
  %v1584 = vadd.f32 0.0, %v1583
  %v1585 = vpop.f32.mrf.mxu0
  %1586 = vdwg.mxu0
  %v1587 = vadd.f32 %v1516, %v1584
  %v1588 = vtanh.pop %v1587
  %v1589 = vld [vmem:[%s824] sm:$0xff]
  %1590 = vmatprep.subr.mxu0 0.0
  %1591 = vmatpush1.msra.mxu0 %v1078
  %1592 = vmatprep.subr.mxu0 0.0
  %1593 = vmatpush1.msra.mxu0 %v1077
  %1594 = vmatprep.subr.mxu0 0.0
  %1595 = vmatpush1.msra.mxu0 %v1076
  %1596 = vmatprep.subr.mxu0 0.0
  %1597 = vmatpush1.msra.mxu0 %v1075
  %1598 = vmatprep.subr.mxu0 0.0
  %1599 = vmatpush1.msra.mxu0 %v1074
  %1600 = vmatprep.subr.mxu0 0.0
  %1601 = vmatpush1.msra.mxu0 %v1073
  %1602 = vmatprep.subr.mxu0 0.0
  %1603 = vmatpush1.msra.mxu0 %v1072
  %1604 = vmatprep.subr.mxu0 0.0
  %1605 = vmatpush1.msra.mxu0 %v1071
  %1606 = vmatprep.subr.mxu0 0.0
  %1607 = vmatpush1.msra.mxu0 %v1070
  %1608 = vmatprep.subr.mxu0 0.0
  %1609 = vmatpush1.msra.mxu0 %v1069
  %1610 = vmatprep.subr.mxu0 0.0
  %1611 = vmatpush1.msra.mxu0 %v1068
  %1612 = vmatprep.subr.mxu0 0.0
  %1613 = vmatpush1.msra.mxu0 %v1067
  %1614 = vmatprep.subr.mxu0 0.0
  %1615 = vmatpush1.msra.mxu0 %v1066
  %1616 = vmatprep.subr.mxu0 0.0
  %1617 = vmatpush1.msra.mxu0 %v1065
  %1618 = vmatprep.subr.mxu0 0.0
  %1619 = vmatpush1.msra.mxu0 %v1064
  %1620 = vmatprep.subr.mxu0 0.0
  %1621 = vmatpush1.msra.mxu0 %v1063
  %1622 = vmatprep.subr.mxu0 0.0
  %1623 = vmatpush2.msra.mxu0 0.0
  %1624 = vmatprep.subr.mxu0 0.0
  %1625 = vmatpush2.msra.mxu0 0.0
  %1626 = vmatprep.subr.mxu0 0.0
  %1627 = vmatpush2.msra.mxu0 0.0
  %1628 = vmatprep.subr.mxu0 0.0
  %1629 = vmatpush2.msra.mxu0 0.0
  %1630 = vmatprep.subr.mxu0 0.0
  %1631 = vmatpush2.msra.mxu0 0.0
  %1632 = vmatprep.subr.mxu0 0.0
  %1633 = vmatpush2.msra.mxu0 0.0
  %1634 = vmatprep.subr.mxu0 0.0
  %1635 = vmatpush2.msra.mxu0 0.0
  %1636 = vmatprep.subr.mxu0 0.0
  %1637 = vmatpush2.msra.mxu0 0.0
  %1638 = vmatprep.subr.mxu0 0.0
  %1639 = vmatpush2.msra.mxu0 0.0
  %1640 = vmatprep.subr.mxu0 0.0
  %1641 = vmatpush2.msra.mxu0 0.0
  %1642 = vmatprep.subr.mxu0 0.0
  %1643 = vmatpush2.msra.mxu0 0.0
  %1644 = vmatprep.subr.mxu0 0.0
  %1645 = vmatpush2.msra.mxu0 0.0
  %1646 = vmatprep.subr.mxu0 0.0
  %1647 = vmatpush2.msra.mxu0 0.0
  %1648 = vmatprep.subr.mxu0 0.0
  %1649 = vmatpush2.msra.mxu0 0.0
  %1650 = vmatprep.subr.mxu0 0.0
  %1651 = vmatpush2.msra.mxu0 0.0
  %1652 = vmatprep.subr.mxu0 0.0
  %1653 = vmatpush2.msra.mxu0 0.0
  %1654 = vmatprep.mubr.f32.mxu0 0.0
  %1655 = vmatmul.mubr.f32.gmra.mxu0 %v1588
  %v1656 = vpop.f32.mrf.mxu0
  %v1657 = vadd.f32 0.0, %v1656
  %v1658 = vpop.f32.mrf.mxu0
  %1659 = vdwg.mxu0
  %v1660 = vadd.f32 %v1589, %v1657
  %v1661 = vtanh.pop %v1660
  %v1662 = vld [vmem:[%s5] sm:$0xff]
  %v1663 = vld [vmem:[%s5 + $0x8] sm:$0xff]
  %v1664 = vld [vmem:[%s5 + $0x10] sm:$0xff]
  %v1665 = vld [vmem:[%s5 + $0x18] sm:$0xff]
  %v1666 = vld [vmem:[%s5 + $0x20] sm:$0xff]
  %v1667 = vld [vmem:[%s5 + $0x28] sm:$0xff]
  %v1668 = vld [vmem:[%s5 + $0x30] sm:$0xff]
  %v1669 = vld [vmem:[%s5 + $0x38] sm:$0xff]
  %v1670 = vld [vmem:[%s5 + $0x40] sm:$0xff]
  %v1671 = vld [vmem:[%s5 + $0x48] sm:$0xff]
  %v1672 = vld [vmem:[%s5 + $0x50] sm:$0xff]
  %v1673 = vld [vmem:[%s5 + $0x58] sm:$0xff]
  %v1674 = vld [vmem:[%s5 + $0x60] sm:$0xff]
  %v1675 = vld [vmem:[%s5 + $0x68] sm:$0xff]
  %v1676 = vld [vmem:[%s5 + $0x70] sm:$0xff]
  %v1677 = vld [vmem:[%s5 + $0x78] sm:$0xff]
  %1678 = vmatprep.subr.mxu0 0.0
  %1679 = vmatpush1.msra.mxu0 %v1677
  %1680 = vmatprep.subr.mxu0 0.0
  %1681 = vmatpush1.msra.mxu0 %v1676
  %1682 = vmatprep.subr.mxu0 0.0
  %1683 = vmatpush1.msra.mxu0 %v1675
  %1684 = vmatprep.subr.mxu0 0.0
  %1685 = vmatpush1.msra.mxu0 %v1674
  %1686 = vmatprep.subr.mxu0 0.0
  %1687 = vmatpush1.msra.mxu0 %v1673
  %1688 = vmatprep.subr.mxu0 0.0
  %1689 = vmatpush1.msra.mxu0 %v1672
  %1690 = vmatprep.subr.mxu0 0.0
  %1691 = vmatpush1.msra.mxu0 %v1671
  %1692 = vmatprep.subr.mxu0 0.0
  %1693 = vmatpush1.msra.mxu0 %v1670
  %1694 = vmatprep.subr.mxu0 0.0
  %1695 = vmatpush1.msra.mxu0 %v1669
  %1696 = vmatprep.subr.mxu0 0.0
  %1697 = vmatpush1.msra.mxu0 %v1668
  %1698 = vmatprep.subr.mxu0 0.0
  %1699 = vmatpush1.msra.mxu0 %v1667
  %1700 = vmatprep.subr.mxu0 0.0
  %1701 = vmatpush1.msra.mxu0 %v1666
  %1702 = vmatprep.subr.mxu0 0.0
  %1703 = vmatpush1.msra.mxu0 %v1665
  %1704 = vmatprep.subr.mxu0 0.0
  %1705 = vmatpush1.msra.mxu0 %v1664
  %1706 = vmatprep.subr.mxu0 0.0
  %1707 = vmatpush1.msra.mxu0 %v1663
  %1708 = vmatprep.subr.mxu0 0.0
  %1709 = vmatpush1.msra.mxu0 %v1662
  %1710 = vmatprep.subr.mxu0 0.0
  %1711 = vmatpush2.msra.mxu0 0.0
  %1712 = vmatprep.subr.mxu0 0.0
  %1713 = vmatpush2.msra.mxu0 0.0
  %1714 = vmatprep.subr.mxu0 0.0
  %1715 = vmatpush2.msra.mxu0 0.0
  %1716 = vmatprep.subr.mxu0 0.0
  %1717 = vmatpush2.msra.mxu0 0.0
  %1718 = vmatprep.subr.mxu0 0.0
  %1719 = vmatpush2.msra.mxu0 0.0
  %1720 = vmatprep.subr.mxu0 0.0
  %1721 = vmatpush2.msra.mxu0 0.0
  %1722 = vmatprep.subr.mxu0 0.0
  %1723 = vmatpush2.msra.mxu0 0.0
  %1724 = vmatprep.subr.mxu0 0.0
  %1725 = vmatpush2.msra.mxu0 0.0
  %1726 = vmatprep.subr.mxu0 0.0
  %1727 = vmatpush2.msra.mxu0 0.0
  %1728 = vmatprep.subr.mxu0 0.0
  %1729 = vmatpush2.msra.mxu0 0.0
  %1730 = vmatprep.subr.mxu0 0.0
  %1731 = vmatpush2.msra.mxu0 0.0
  %1732 = vmatprep.subr.mxu0 0.0
  %1733 = vmatpush2.msra.mxu0 0.0
  %1734 = vmatprep.subr.mxu0 0.0
  %1735 = vmatpush2.msra.mxu0 0.0
  %1736 = vmatprep.subr.mxu0 0.0
  %1737 = vmatpush2.msra.mxu0 0.0
  %1738 = vmatprep.subr.mxu0 0.0
  %1739 = vmatpush2.msra.mxu0 0.0
  %1740 = vmatprep.subr.mxu0 0.0
  %1741 = vmatpush2.msra.mxu0 0.0
  %1742 = vmatprep.mubr.f32.mxu0 0.0
  %1743 = vmatmul.mubr.f32.gmra.mxu0 %v1661
  %v1744 = vpop.f32.mrf.mxu0
  %v1745 = vadd.f32 0.0, %v1744
  %v1746 = vpop.f32.mrf.mxu0
  %1747 = vdwg.mxu0
  %1748 = vst [vmem:[%s6] sm:$0xff] %v1745
  // Predicated region
  $region26: #{eiie_recurrent_forward.1} parent=0 // pred_check
    _
  $region27: #{eiie_recurrent_forward.1} parent=0 // pred_check_branch
    %1750 = sbr.rel (0) target = $region29
  $region28: #{eiie_recurrent_forward.1} parent=0 // pred_region
    _
  $region29: #{eiie_recurrent_forward.1} parent=0 // pred_fallthru
    _
  // Predicated region
  $region30: #{eiie_recurrent_forward.1} parent=0 // pred_check
    _
  $region31: #{eiie_recurrent_forward.1} parent=0 // pred_check_branch
    %1752 = sbr.rel (0) target = $region33
  $region32: #{eiie_recurrent_forward.1} parent=0 // pred_region
    _
  $region33: #{eiie_recurrent_forward.1} parent=0 // pred_fallthru
    _

</llo_original>
